<compile_context>
chip_gen: v7x
topology: tpu7x:2x2x1
jax: 0.10.0
libtpu: 0.0.40
codegen_flags: <defaults>
</compile_context>

<pallas_src>
import functools

import jax
import jax.numpy as jnp
import numpy as np
from jax.experimental import pallas as pl
from jax.experimental.pallas import tpu as pltpu


def _round_up(v, m):
    return (v + m - 1) // m * m


def _gefe_flatconv_kernel(w_ref, b_ref, x_ref, o_ref, *, shifts, tile_n):
    """One lane-dense output tile of the flattened lifting convolution.

    w_ref : (k*k, OC4, C_in)          rotated filter bank, one (OC4, C_in) per tap
    b_ref : (OC4, 1) float32          bias (repeated over the 4 rotations)
    x_ref : (1, C_in, tile_n + halo)  flattened padded input tile (with halo)
    o_ref : (OC4, tile_n)             output tile (flat spatial on lanes)
    """
    window = x_ref[0]                                      # (C_in, tile_n + halo)
    oc4 = o_ref.shape[0]
    # Bias epilogue folded into the accumulator init; kept in f32 (cheap on v5e too).
    acc = jnp.broadcast_to(b_ref[...], (oc4, tile_n)).astype(jnp.float32)
    for t, s in enumerate(shifts):                         # static unroll over k*k taps
        acc = acc + jnp.dot(w_ref[t], window[:, s:s + tile_n],
                            preferred_element_type=jnp.float32)
    o_ref[...] = acc.astype(o_ref.dtype)


def gefe_lifting_conv2d(x, weight, bias, *, stride=1, padding=0, dilation=1,
                        tile_n=512, matmul_dtype=jnp.bfloat16):
    """x: (B, C_in, H, W) NCHW.  weight: (OC, C_in, k, k).  bias: (OC,) or None.

    Returns (B, OC, 4, H_out, W_out), matching GefeLiftingConv2d.forward.
    """
    B, C_in, H, W = x.shape
    OC, _, k, _ = weight.shape
    OC4 = OC * 4

    # build_filter(): stack the 4 planar rotations of the base weight.
    filt = jnp.stack([jnp.rot90(weight, i, axes=(-2, -1)) for i in range(4)], axis=1)
    filt = filt.reshape(OC4, C_in, k, k)
    # Per-tap weight matrices: w_taps[ki*k + kj] = filt[:, :, ki, kj]  -> (OC4, C_in).
    w_taps = jnp.transpose(filt, (2, 3, 0, 1)).reshape(k * k, OC4, C_in)
    w_taps = w_taps.astype(matmul_dtype)

    if bias is not None:
        b4 = jnp.repeat(bias[:, None], 4, axis=1).reshape(OC4, 1).astype(jnp.float32)
    else:
        b4 = jnp.zeros((OC4, 1), jnp.float32)

    H_pad, W_pad = H + 2 * padding, W + 2 * padding
    H_out = (H_pad - dilation * (k - 1) - 1) // stride + 1
    W_out = (W_pad - dilation * (k - 1) - 1) // stride + 1

    # Flatten (batch, spatial) of the zero-padded input onto one axis:
    #   x_flat[c, b*H_pad*W_pad + r*W_pad + col] = x_pad[b, c, r, col]
    x_pad = jnp.pad(x, ((0, 0), (0, 0), (padding, padding), (padding, padding)))
    n_flat = B * H_pad * W_pad
    x_flat = jnp.transpose(x_pad, (1, 0, 2, 3)).reshape(C_in, n_flat)

    # Dense flat conv: out_full[o, p] = b[o] + sum_t w_taps[t, o, :] @ x_flat[:, p + s_t]
    # with static shifts s_t = (ki*W_pad + kj)*dilation.  Valid output positions are
    # cropped out afterwards; out-of-window positions just compute garbage on zeros.
    shifts = tuple((ki * W_pad + kj) * dilation for ki in range(k) for kj in range(k))
    halo = max(shifts)

    tn = min(_round_up(tile_n, 128), _round_up(n_flat, 128))
    nt = -(-n_flat // tn)                 # number of lane-dense output tiles
    n_out = nt * tn                       # multiple of 128 -> unmasked stores
    n_in = n_out + halo

    x_flat = jnp.pad(x_flat, ((0, 0), (0, n_in - n_flat))).astype(matmul_dtype)
    # Overlapping input tiles (tile + halo); layout glue done once by XLA.
    x_tiles = jnp.stack([x_flat[:, n * tn:n * tn + tn + halo] for n in range(nt)],
                        axis=0)                              # (nt, C_in, tn + halo)

    kernel = functools.partial(_gefe_flatconv_kernel, shifts=shifts, tile_n=tn)

    itemsize = jnp.dtype(matmul_dtype).itemsize
    cost = pl.CostEstimate(
        flops=2 * OC4 * C_in * k * k * n_out,
        transcendentals=0,
        bytes_accessed=int(x_tiles.size * itemsize + w_taps.size * itemsize
                           + b4.size * 4 + OC4 * n_out * jnp.dtype(x.dtype).itemsize),
    )

    out_flat = pl.pallas_call(
        kernel,
        out_shape=jax.ShapeDtypeStruct((OC4, n_out), x.dtype),
        grid=(nt,),
        in_specs=[
            pl.BlockSpec((k * k, OC4, C_in), lambda n: (0, 0, 0)),   # filter bank (resident)
            pl.BlockSpec((OC4, 1), lambda n: (0, 0)),                # bias        (resident)
            pl.BlockSpec((1, C_in, tn + halo), lambda n: (n, 0, 0)),  # input tile + halo
        ],
        out_specs=pl.BlockSpec((OC4, tn), lambda n: (0, n)),         # lane-dense output tile
        compiler_params=pltpu.CompilerParams(
            dimension_semantics=("parallel",)),
        cost_estimate=cost,
    )(w_taps, b4, x_tiles)

    # Crop the dense flat map back to the strided conv output and restore NCHW-ish layout.
    out = out_flat[:, :n_flat].reshape(OC4, B, H_pad, W_pad)
    out = out[:, :, 0:(H_out - 1) * stride + 1:stride, 0:(W_out - 1) * stride + 1:stride]
    out = jnp.transpose(out, (1, 0, 2, 3)).reshape(B, OC, 4, H_out, W_out)
    return out.astype(x.dtype)


if __name__ == "__main__":
    # Small shapes consistent with the module's forward pass.
    B, C_in, H, W = 2, 4, 16, 16
    OC, k = 8, 3
    stride, padding, dilation = 1, 1, 1

    key = jax.random.PRNGKey(0)
    kx, kw = jax.random.split(key)
    x = jax.random.normal(kx, (B, C_in, H, W), dtype=jnp.float32)
    # __init__: weight ~ N(0, 1/sqrt(OC*C_in)), bias = zeros(OC)
    weight = jax.random.normal(kw, (OC, C_in, k, k), dtype=jnp.float32) / jnp.sqrt(OC * C_in)
    bias = jnp.zeros((OC,), dtype=jnp.float32)

    out = gefe_lifting_conv2d(x, weight, bias,
                              stride=stride, padding=padding, dilation=dilation)
    out = jax.block_until_ready(out)
    assert out.shape == (B, OC, 4, H, W), out.shape

    # Reference: XLA conv with the same rotated filter bank and the same bf16 input
    # rounding the kernel applies (products are exact; accumulation is f32 in both).
    filt_ref = jnp.stack([jnp.rot90(weight, i, axes=(-2, -1)) for i in range(4)],
                         axis=1).reshape(OC * 4, C_in, k, k)
    x_b = x.astype(jnp.bfloat16).astype(jnp.float32)
    f_b = filt_ref.astype(jnp.bfloat16).astype(jnp.float32)
    ref = jax.lax.conv_general_dilated(
        x_b, f_b,
        window_strides=(stride, stride),
        padding=((padding, padding), (padding, padding)),
        rhs_dilation=(dilation, dilation),
        dimension_numbers=("NCHW", "OIHW", "NCHW"),
        precision=jax.lax.Precision.HIGHEST)
    bias4 = jnp.repeat(bias[:, None], 4, axis=1).reshape(OC * 4)
    ref = (ref + bias4[None, :, None, None]).reshape(B, OC, 4, H, W)

    np.testing.assert_allclose(np.asarray(out), np.asarray(ref), atol=2e-3, rtol=2e-3)
    print("KERNEL_OK")
</pallas_src>

<mosaic_0001>
module attributes {stable_mosaic.version = 11 : i64} {
  func.func @_gefe_flatconv_kernel(%arg0: i32, %arg1: memref<9x32x4xbf16, #tpu.memory_space<vmem>>, %arg2: memref<32x1xf32, #tpu.memory_space<vmem>>, %arg3: memref<1x4x550xbf16, #tpu.memory_space<vmem>>, %arg4: memref<32x512xf32, #tpu.memory_space<vmem>>) attributes {dimension_semantics = [#tpu.dimension_semantics<parallel>], iteration_bounds = array<i64: 2>, scalar_prefetch = 0 : i64, scratch_operands = 0 : i64, tpu.core_type = #tpu.core_type<tc>, window_params = [{pipeline_mode = #tpu.pipeline_mode<synchronous>, transform_indices = @transform_0, window_bounds = array<i64: 9, 32, 4>}, {pipeline_mode = #tpu.pipeline_mode<synchronous>, transform_indices = @transform_1, window_bounds = array<i64: 32, 1>}, {transform_indices = @transform_2, window_bounds = array<i64: 1, 4, 550>}, {transform_indices = @transform_3, window_bounds = array<i64: 32, 512>}]} {
    %c0 = arith.constant 0 : index
    %c0_0 = arith.constant 0 : index
    %c0_1 = arith.constant 0 : index
    %0 = vector.load %arg3[%c0, %c0_0, %c0_1] : memref<1x4x550xbf16, #tpu.memory_space<vmem>>, vector<1x4x550xbf16>
    %1 = vector.shape_cast %0 : vector<1x4x550xbf16> to vector<4x550xbf16>
    %c0_2 = arith.constant 0 : index
    %c0_3 = arith.constant 0 : index
    %2 = vector.load %arg2[%c0_2, %c0_3] : memref<32x1xf32, #tpu.memory_space<vmem>>, vector<32x1xf32>
    %3 = vector.shape_cast %2 : vector<32x1xf32> to vector<32x1xf32>
    %4 = vector.broadcast %3 : vector<32x1xf32> to vector<32x512xf32>
    %c0_4 = arith.constant 0 : index
    %c0_5 = arith.constant 0 : index
    %c0_6 = arith.constant 0 : index
    %5 = vector.load %arg1[%c0_4, %c0_5, %c0_6] : memref<9x32x4xbf16, #tpu.memory_space<vmem>>, vector<1x32x4xbf16>
    %6 = vector.shape_cast %5 : vector<1x32x4xbf16> to vector<32x4xbf16>
    %7 = vector.extract_strided_slice %1 {offsets = [0, 0], sizes = [4, 512], strides = [1, 1]} : vector<4x550xbf16> to vector<4x512xbf16>
    %cst = arith.constant dense<0.000000e+00> : vector<32x512xf32>
    %8 = tpu.matmul %6, %7, %cst {dimension_numbers = #tpu.dot_dimension_numbers<[1], [0], [0], [1], [0, 0, 1, 1], [], []>} : vector<32x4xbf16>, vector<4x512xbf16>, vector<32x512xf32> -> vector<32x512xf32>
    %9 = arith.addf %4, %8 : vector<32x512xf32>
    %c1 = arith.constant 1 : index
    %c0_7 = arith.constant 0 : index
    %c0_8 = arith.constant 0 : index
    %10 = vector.load %arg1[%c1, %c0_7, %c0_8] : memref<9x32x4xbf16, #tpu.memory_space<vmem>>, vector<1x32x4xbf16>
    %11 = vector.shape_cast %10 : vector<1x32x4xbf16> to vector<32x4xbf16>
    %12 = vector.extract_strided_slice %1 {offsets = [0, 1], sizes = [4, 512], strides = [1, 1]} : vector<4x550xbf16> to vector<4x512xbf16>
    %cst_9 = arith.constant dense<0.000000e+00> : vector<32x512xf32>
    %13 = tpu.matmul %11, %12, %cst_9 {dimension_numbers = #tpu.dot_dimension_numbers<[1], [0], [0], [1], [0, 0, 1, 1], [], []>} : vector<32x4xbf16>, vector<4x512xbf16>, vector<32x512xf32> -> vector<32x512xf32>
    %14 = arith.addf %9, %13 : vector<32x512xf32>
    %c2 = arith.constant 2 : index
    %c0_10 = arith.constant 0 : index
    %c0_11 = arith.constant 0 : index
    %15 = vector.load %arg1[%c2, %c0_10, %c0_11] : memref<9x32x4xbf16, #tpu.memory_space<vmem>>, vector<1x32x4xbf16>
    %16 = vector.shape_cast %15 : vector<1x32x4xbf16> to vector<32x4xbf16>
    %17 = vector.extract_strided_slice %1 {offsets = [0, 2], sizes = [4, 512], strides = [1, 1]} : vector<4x550xbf16> to vector<4x512xbf16>
    %cst_12 = arith.constant dense<0.000000e+00> : vector<32x512xf32>
    %18 = tpu.matmul %16, %17, %cst_12 {dimension_numbers = #tpu.dot_dimension_numbers<[1], [0], [0], [1], [0, 0, 1, 1], [], []>} : vector<32x4xbf16>, vector<4x512xbf16>, vector<32x512xf32> -> vector<32x512xf32>
    %19 = arith.addf %14, %18 : vector<32x512xf32>
    %c3 = arith.constant 3 : index
    %c0_13 = arith.constant 0 : index
    %c0_14 = arith.constant 0 : index
    %20 = vector.load %arg1[%c3, %c0_13, %c0_14] : memref<9x32x4xbf16, #tpu.memory_space<vmem>>, vector<1x32x4xbf16>
    %21 = vector.shape_cast %20 : vector<1x32x4xbf16> to vector<32x4xbf16>
    %22 = vector.extract_strided_slice %1 {offsets = [0, 18], sizes = [4, 512], strides = [1, 1]} : vector<4x550xbf16> to vector<4x512xbf16>
    %cst_15 = arith.constant dense<0.000000e+00> : vector<32x512xf32>
    %23 = tpu.matmul %21, %22, %cst_15 {dimension_numbers = #tpu.dot_dimension_numbers<[1], [0], [0], [1], [0, 0, 1, 1], [], []>} : vector<32x4xbf16>, vector<4x512xbf16>, vector<32x512xf32> -> vector<32x512xf32>
    %24 = arith.addf %19, %23 : vector<32x512xf32>
    %c4 = arith.constant 4 : index
    %c0_16 = arith.constant 0 : index
    %c0_17 = arith.constant 0 : index
    %25 = vector.load %arg1[%c4, %c0_16, %c0_17] : memref<9x32x4xbf16, #tpu.memory_space<vmem>>, vector<1x32x4xbf16>
    %26 = vector.shape_cast %25 : vector<1x32x4xbf16> to vector<32x4xbf16>
    %27 = vector.extract_strided_slice %1 {offsets = [0, 19], sizes = [4, 512], strides = [1, 1]} : vector<4x550xbf16> to vector<4x512xbf16>
    %cst_18 = arith.constant dense<0.000000e+00> : vector<32x512xf32>
    %28 = tpu.matmul %26, %27, %cst_18 {dimension_numbers = #tpu.dot_dimension_numbers<[1], [0], [0], [1], [0, 0, 1, 1], [], []>} : vector<32x4xbf16>, vector<4x512xbf16>, vector<32x512xf32> -> vector<32x512xf32>
    %29 = arith.addf %24, %28 : vector<32x512xf32>
    %c5 = arith.constant 5 : index
    %c0_19 = arith.constant 0 : index
    %c0_20 = arith.constant 0 : index
    %30 = vector.load %arg1[%c5, %c0_19, %c0_20] : memref<9x32x4xbf16, #tpu.memory_space<vmem>>, vector<1x32x4xbf16>
    %31 = vector.shape_cast %30 : vector<1x32x4xbf16> to vector<32x4xbf16>
    %32 = vector.extract_strided_slice %1 {offsets = [0, 20], sizes = [4, 512], strides = [1, 1]} : vector<4x550xbf16> to vector<4x512xbf16>
    %cst_21 = arith.constant dense<0.000000e+00> : vector<32x512xf32>
    %33 = tpu.matmul %31, %32, %cst_21 {dimension_numbers = #tpu.dot_dimension_numbers<[1], [0], [0], [1], [0, 0, 1, 1], [], []>} : vector<32x4xbf16>, vector<4x512xbf16>, vector<32x512xf32> -> vector<32x512xf32>
    %34 = arith.addf %29, %33 : vector<32x512xf32>
    %c6 = arith.constant 6 : index
    %c0_22 = arith.constant 0 : index
    %c0_23 = arith.constant 0 : index
    %35 = vector.load %arg1[%c6, %c0_22, %c0_23] : memref<9x32x4xbf16, #tpu.memory_space<vmem>>, vector<1x32x4xbf16>
    %36 = vector.shape_cast %35 : vector<1x32x4xbf16> to vector<32x4xbf16>
    %37 = vector.extract_strided_slice %1 {offsets = [0, 36], sizes = [4, 512], strides = [1, 1]} : vector<4x550xbf16> to vector<4x512xbf16>
    %cst_24 = arith.constant dense<0.000000e+00> : vector<32x512xf32>
    %38 = tpu.matmul %36, %37, %cst_24 {dimension_numbers = #tpu.dot_dimension_numbers<[1], [0], [0], [1], [0, 0, 1, 1], [], []>} : vector<32x4xbf16>, vector<4x512xbf16>, vector<32x512xf32> -> vector<32x512xf32>
    %39 = arith.addf %34, %38 : vector<32x512xf32>
    %c7 = arith.constant 7 : index
    %c0_25 = arith.constant 0 : index
    %c0_26 = arith.constant 0 : index
    %40 = vector.load %arg1[%c7, %c0_25, %c0_26] : memref<9x32x4xbf16, #tpu.memory_space<vmem>>, vector<1x32x4xbf16>
    %41 = vector.shape_cast %40 : vector<1x32x4xbf16> to vector<32x4xbf16>
    %42 = vector.extract_strided_slice %1 {offsets = [0, 37], sizes = [4, 512], strides = [1, 1]} : vector<4x550xbf16> to vector<4x512xbf16>
    %cst_27 = arith.constant dense<0.000000e+00> : vector<32x512xf32>
    %43 = tpu.matmul %41, %42, %cst_27 {dimension_numbers = #tpu.dot_dimension_numbers<[1], [0], [0], [1], [0, 0, 1, 1], [], []>} : vector<32x4xbf16>, vector<4x512xbf16>, vector<32x512xf32> -> vector<32x512xf32>
    %44 = arith.addf %39, %43 : vector<32x512xf32>
    %c8 = arith.constant 8 : index
    %c0_28 = arith.constant 0 : index
    %c0_29 = arith.constant 0 : index
    %45 = vector.load %arg1[%c8, %c0_28, %c0_29] : memref<9x32x4xbf16, #tpu.memory_space<vmem>>, vector<1x32x4xbf16>
    %46 = vector.shape_cast %45 : vector<1x32x4xbf16> to vector<32x4xbf16>
    %47 = vector.extract_strided_slice %1 {offsets = [0, 38], sizes = [4, 512], strides = [1, 1]} : vector<4x550xbf16> to vector<4x512xbf16>
    %cst_30 = arith.constant dense<0.000000e+00> : vector<32x512xf32>
    %48 = tpu.matmul %46, %47, %cst_30 {dimension_numbers = #tpu.dot_dimension_numbers<[1], [0], [0], [1], [0, 0, 1, 1], [], []>} : vector<32x4xbf16>, vector<4x512xbf16>, vector<32x512xf32> -> vector<32x512xf32>
    %49 = arith.addf %44, %48 : vector<32x512xf32>
    %c0_31 = arith.constant 0 : index
    %c0_32 = arith.constant 0 : index
    %50 = vector.load %arg4[%c0_31, %c0_32] : memref<32x512xf32, #tpu.memory_space<vmem>>, vector<32x512xf32>
    tpu.vector_store %arg4[%c0_31, %c0_32], %49 {strides = array<i32>} : memref<32x512xf32, #tpu.memory_space<vmem>>, vector<32x512xf32>,
    return
  }
  func.func @transform_0(%arg0: i32) -> (i32, i32, i32) {
    %c0_i32 = arith.constant 0 : i32
    %c0_i32_0 = arith.constant 0 : i32
    %c0_i32_1 = arith.constant 0 : i32
    %c0_i32_2 = arith.constant 0 : i32
    return %c0_i32, %c0_i32_0, %c0_i32_1 : i32, i32, i32
  }
  func.func @transform_1(%arg0: i32) -> (i32, i32) {
    %c0_i32 = arith.constant 0 : i32
    %c0_i32_0 = arith.constant 0 : i32
    %c0_i32_1 = arith.constant 0 : i32
    return %c0_i32, %c0_i32_0 : i32, i32
  }
  func.func @transform_2(%arg0: i32) -> (i32, i32, i32) {
    %c0_i32 = arith.constant 0 : i32
    %c0_i32_0 = arith.constant 0 : i32
    %c0_i32_1 = arith.constant 0 : i32
    return %arg0, %c0_i32, %c0_i32_0 : i32, i32, i32
  }
  func.func @transform_3(%arg0: i32) -> (i32, i32) {
    %c0_i32 = arith.constant 0 : i32
    %c0_i32_0 = arith.constant 0 : i32
    return %c0_i32, %arg0 : i32, i32
  }
}

</mosaic_0001>

<llo_original>
// kernel: tpu_custom_call.1
$region0: #{tpu_custom_call.1}
  #allocation0 [shape = 'u32[]', space=smem, size = 0x4, offset = 0x4, fixed_abs, tag = 'smem constant byte address 0x4 - core index']
  #allocation1 [shape = 'u32[144,128]{1,0:T(1,128)}', space=vmem, size = 0x12000, scoped, tag = 'internal scratch']
  %s0 = inlined_call_operand.vmem [shape: bf16[9,32,4], index: 0, kind: input, shape index: {}]
  %s1 = inlined_call_operand.vmem [shape: f32[32,1], index: 1, kind: input, shape index: {}]
  %s2 = inlined_call_operand.vmem [shape: bf16[2,4,550], index: 2, kind: input, shape index: {}]
  %s3 = inlined_call_operand.hbm [shape: f32[32,1024], index: 3, kind: output, shape index: {}]
  %s4 = sld [smem:[#allocation0]]
  $region45: #{tpu_custom_call.1} parent=0
    _
  %s6 = ssub.s32 1, %s4
  %s7 = scalar_select 0, %s6, %s4
  $region1: #{tpu_custom_call.1} parent=0
    #allocation2 [shape = 'u8[131072]{0}', space=vmem, size = 0x20000, scoped, tag = 'output window, operand 0']
    #allocation3 [shape = 's32[2]{0}', space=sflag, size = 0x8, scoped, tag = 'scoped memory for tpu_custom_call.1']
    %8 = vsyncpa [#allocation3], 0
    %s9 = scalar_lea.sflag [#allocation3], 1
    %10 = vsyncpa %s9, 0
    loop: start=0, step=1, limit=4
    $region2: #{tpu_custom_call.1} parent=1 // loop_pre_header
      _
    $region3: #{tpu_custom_call.1} parent=1 // loop_header
      %s12 = sphi 0, %s16
      %p13 = scmp.ge.s32.totalorder %s12, 4
      %s20 = sphi 0, %s20
      %s22 = sphi 0, %s20
      %s23 = sphi 0, %s22
      %s37 = sphi 0, %s23
      %s41 = sphi 0, %s41
      %s43 = sphi 0, %s41
      %s44 = sphi 0, %s43
      %s58 = sphi 0, %s44
      %s64 = sphi 0, %s66
      %s67 = sphi 0, %s64
      %s68 = sphi 0, %s67
      %s84 = sphi 0, %s68
      %s90 = sphi 0, %s92
      %s93 = sphi 0, %s90
      %s94 = sphi 0, %s93
      %s110 = sphi 0, %s94
    $region4: #{tpu_custom_call.1} parent=1 // loop_header_branch
      %15 = sbr.rel (%p13) target = $region8
    $region5: #{tpu_custom_call.1} parent=1 // loop_body
      %s17 = ssub.s32 %s12, 1
      %s18 = ssub.s32 %s12, 2
      %s19 = sadd.s32 %s12, 1
      %s21 = sadd.s32 %s20, 1
      %p24 = scmp.eq.s32.totalorder %s12, 1
      %p25 = scmp.ne.s32.totalorder %s20, %s22
      %p26 = scmp.eq.s32.totalorder %s12, 0
      %p27 = por %p25, %p26
      %p28 = scmp.ne.s32.totalorder %s20, %s22
      %p29 = scmp.eq.s32.totalorder %s17, 1
      %p30 = por %p28, %p29
      %p31 = scmp.ne.s32.totalorder %s22, %s23
      %p32 = scmp.eq.s32.totalorder %s17, 0
      %p33 = por %p31, %p32
      %p34 = scmp.ne.s32.totalorder %s22, %s23
      %p35 = scmp.eq.s32.totalorder %s18, 1
      %p36 = por %p34, %p35
      %p38 = scmp.ne.s32.totalorder %s23, %s37
      %p39 = scmp.eq.s32.totalorder %s18, 0
      %p40 = por %p38, %p39
      %s42 = sadd.s32 %s41, 1
      %p45 = scmp.eq.s32.totalorder %s12, 1
      %p46 = scmp.ne.s32.totalorder %s41, %s43
      %p47 = scmp.eq.s32.totalorder %s12, 0
      %p48 = por %p46, %p47
      %p49 = scmp.ne.s32.totalorder %s41, %s43
      %p50 = scmp.eq.s32.totalorder %s17, 1
      %p51 = por %p49, %p50
      %p52 = scmp.ne.s32.totalorder %s43, %s44
      %p53 = scmp.eq.s32.totalorder %s17, 0
      %p54 = por %p52, %p53
      %p55 = scmp.ne.s32.totalorder %s43, %s44
      %p56 = scmp.eq.s32.totalorder %s18, 1
      %p57 = por %p55, %p56
      %p59 = scmp.ne.s32.totalorder %s44, %s58
      %p60 = scmp.eq.s32.totalorder %s18, 0
      %p61 = por %p59, %p60
      %s62 = ssub.s32 %s12, %s19
      %p63 = scmp.eq.s32.totalorder %s62, 0
      %s65 = sadd.s32 %s64, 1
      %s66 = scalar_select %p63, %s64, %s65
      %p69 = pneg %p63
      %p70 = scmp.eq.s32.totalorder %s12, 1
      %p71 = por %p69, %p70
      %p72 = scmp.ne.s32.totalorder %s64, %s67
      %p73 = scmp.eq.s32.totalorder %s12, 0
      %p74 = por %p72, %p73
      %p75 = scmp.ne.s32.totalorder %s64, %s67
      %p76 = scmp.eq.s32.totalorder %s17, 1
      %p77 = por %p75, %p76
      %p78 = scmp.ne.s32.totalorder %s67, %s68
      %p79 = scmp.eq.s32.totalorder %s17, 0
      %p80 = por %p78, %p79
      %p81 = scmp.ne.s32.totalorder %s67, %s68
      %p82 = scmp.eq.s32.totalorder %s18, 1
      %p83 = por %p81, %p82
      %p85 = scmp.ne.s32.totalorder %s68, %s84
      %p86 = scmp.eq.s32.totalorder %s18, 0
      %p87 = por %p85, %p86
      %s88 = ssub.s32 %s12, %s19
      %p89 = scmp.eq.s32.totalorder %s88, 0
      %s91 = sadd.s32 %s90, 1
      %s92 = scalar_select %p89, %s90, %s91
      %p95 = pneg %p89
      %p96 = scmp.eq.s32.totalorder %s12, 1
      %p97 = por %p95, %p96
      %p98 = scmp.ne.s32.totalorder %s90, %s93
      %p99 = scmp.eq.s32.totalorder %s12, 0
      %p100 = por %p98, %p99
      %p101 = scmp.ne.s32.totalorder %s90, %s93
      %p102 = scmp.eq.s32.totalorder %s17, 1
      %p103 = por %p101, %p102
      %p104 = scmp.ne.s32.totalorder %s93, %s94
      %p105 = scmp.eq.s32.totalorder %s17, 0
      %p106 = por %p104, %p105
      %p107 = scmp.ne.s32.totalorder %s93, %s94
      %p108 = scmp.eq.s32.totalorder %s18, 1
      %p109 = por %p107, %p108
      %p111 = scmp.ne.s32.totalorder %s94, %s110
      %p112 = scmp.eq.s32.totalorder %s18, 0
      %p113 = por %p111, %p112
      %p114 = scmp.le.s32.totalorder 1, %s12
      %p115 = scmp.lt.s32.totalorder %s12, 3
      %p116 = pnand %p114, %p115
      %p117 = pneg %p116
      // Predicated region
      $region9: #{tpu_custom_call.1} parent=5 // pred_check
        _
      $region10: #{tpu_custom_call.1} parent=5 // pred_check_branch
        %119 = sbr.rel (%p116) target = $region12
      $region11: #{tpu_custom_call.1} parent=5 // pred_region
        %s120 = ssub.s32 %s12, 1
        // Predicated region
        $region13: #{tpu_custom_call.1} parent=11 // pred_check
          %p121 = pneg %p33
        $region14: #{tpu_custom_call.1} parent=11 // pred_check_branch
          %123 = sbr.rel (%p121) target = $region16
        $region15: #{tpu_custom_call.1} parent=11 // pred_region
          _
        $region16: #{tpu_custom_call.1} parent=11 // pred_fallthru
          _
        // Predicated region
        $region17: #{tpu_custom_call.1} parent=11 // pred_check
          %p124 = pneg %p54
        $region18: #{tpu_custom_call.1} parent=11 // pred_check_branch
          %126 = sbr.rel (%p124) target = $region20
        $region19: #{tpu_custom_call.1} parent=11 // pred_region
          _
        $region20: #{tpu_custom_call.1} parent=11 // pred_fallthru
          _
      $region12: #{tpu_custom_call.1} parent=5 // pred_fallthru
        _
      %p127 = scmp.lt.s32.totalorder %s12, 2
      // Predicated region
      $region21: #{tpu_custom_call.1} parent=5 // pred_check
        %p128 = pneg %p127
      $region22: #{tpu_custom_call.1} parent=5 // pred_check_branch
        %130 = sbr.rel (%p128) target = $region24
      $region23: #{tpu_custom_call.1} parent=5 // pred_region
        // Predicated region
        $region25: #{tpu_custom_call.1} parent=23 // pred_check
          %p131 = pneg %p74
        $region26: #{tpu_custom_call.1} parent=23 // pred_check_branch
          %133 = sbr.rel (%p131) target = $region28
        $region27: #{tpu_custom_call.1} parent=23 // pred_region
          %p134 = scmp.lt.s32.totalorder %s12, 1
          %s135 = scalar_select %p134, %s12, 1
          %s136 = smul.addr %s135, 5
          %s137 = smul.addr %s136, 2
          %s138 = scalar_lea.vmem %s2, %s137
        $region28: #{tpu_custom_call.1} parent=23 // pred_fallthru
          _
      $region24: #{tpu_custom_call.1} parent=5 // pred_fallthru
        _
      %p139 = scmp.le.s32.totalorder 1, %s12
      %p140 = scmp.lt.s32.totalorder %s12, 3
      %p141 = pnand %p139, %p140
      %p142 = pneg %p141
      // Predicated region
      $region29: #{tpu_custom_call.1} parent=5 // pred_check
        _
      $region30: #{tpu_custom_call.1} parent=5 // pred_check_branch
        %144 = sbr.rel (%p141) target = $region32
      $region31: #{tpu_custom_call.1} parent=5 // pred_region
        %s145 = ssub.s32 %s12, 1
        %p146 = pneg %p33
        %p147 = pneg %p30
        %p148 = pneg %p54
        %p149 = pneg %p51
        %p150 = scmp.lt.s32.totalorder %s17, 1
        %s151 = scalar_select %p150, %s17, 1
        %s152 = smul.addr %s151, 5
        %s153 = smul.addr %s152, 2
        %s154 = scalar_lea.vmem %s2, %s153
        %p155 = pneg %p80
        %p156 = pneg %p77
        %p157 = pneg %p106
        %p158 = pneg %p103
        %s159 = sand.u32 %s93, 1
        %s160 = scalar_lea.sflag [#allocation3], %s159
        %s161 = sand.u32 %s93, 1
        %s162 = smul.addr %s161, 128
        %s163 = scalar_lea.vmem [#allocation2], %s162
        %p164 = scmp.lt.s32.totalorder %s17, 1
        %s165 = scalar_select %p164, %s17, 1
        %s166 = smul.addr %s165, 5
        %s167 = smul.addr %s166, 2
        %s168 = scalar_lea.vmem %s2, %s167
        %s169 = smul.u32 4, %s17
        %v171 = vld [vmem:[%s168] sm:$0xff]
        %v172 = vld [vmem:[%s168 + $0x8] sm:$0x3]
        %v173 = vld [vmem:[%s1] sm:$0xff]
        %v174 = vld [vmem:[%s1 + $0x8] sm:$0xff]
        %v175 = vld [vmem:[%s1 + $0x10] sm:$0xff]
        %v176 = vld [vmem:[%s1 + $0x18] sm:$0xff]
        %178 = vset.pattern.permute.xlu0 0
        %179 = vperm.xlu0 %178, %v173
        %v180 = vpop.permute.xlu0 %179
        %183 = vset.pattern.permute.xlu0 0
        %184 = vperm.xlu0 %183, %v174
        %v185 = vpop.permute.xlu0 %184
        %188 = vset.pattern.permute.xlu0 0
        %189 = vperm.xlu0 %188, %v175
        %v190 = vpop.permute.xlu0 %189
        %193 = vset.pattern.permute.xlu0 0
        %194 = vperm.xlu0 %193, %v176
        %v195 = vpop.permute.xlu0 %194
        %v197 = vld [vmem:[%s0] sm:$0xf]
        %v198 = vld [vmem:[%s0 + $0x4] sm:$0xf]
        %v199 = vld [vmem:[%s0 + $0x8] sm:$0xf]
        %v200 = vld [vmem:[%s0 + $0xc] sm:$0xf]
        %v205 = vunpack.c.l.b16 %v197
        %v206 = vunpack.c.l.b16 %v198
        %v207 = vunpack.c.l.b16 %v199
        %v208 = vunpack.c.l.b16 %v200
        %v209 = vpack.c.b16 %v206, %v205
        %v210 = vpack.c.b16 %v208, %v207
        %v212 = vcombine.high %v171, %v171
        %v214 = vunpack.c.l.s4 1983009808
        %v215 = vunpack.c.0.s8 %v214
        %v216 = vlaneseq
        %v217 = vshrl.u32 %v216, 7
        %v218 = vsub.s32 %v215, %v217
        %v219 = vrot.slane %v171, %v218
        %v221 = vunpack.c.l.s4 1983009808
        %v222 = vunpack.c.0.s8 %v221
        %v223 = vlaneseq
        %v224 = vshrl.u32 %v223, 7
        %v225 = vsub.s32 %v222, %v224
        %v226 = vrot.slane %v212, %v225
        %v227 = vcombine.high %v219, %v219
        %v228 = vcombine.high %v226, %v226
        %vm229 = vcmask 31744
        %v231 = vsel %vm229, %v209, 0
        %v234 = vsel %vm229, %v210, 0
        %vm236 = vcmask 1041408
        %v238 = vsel %vm236, %v219, 0
        %v241 = vsel %vm236, %v227, 0
        %v244 = vsel %vm236, %v226, 0
        %v247 = vsel %vm236, %v228, 0
        %249 = vmatprep.subr.bf16.mxu0 %v241
        %250 = vmatpush1.bf16.msra.mxu0 %v238
        %251 = vmatprep.subr.bf16.mxu0 0
        %252 = vmatpush1.bf16.msra.mxu0 0
        %253 = vmatprep.subr.bf16.mxu0 0
        %254 = vmatpush1.bf16.msra.mxu0 0
        %255 = vmatprep.subr.bf16.mxu0 0
        %256 = vmatpush1.bf16.msra.mxu0 0
        %257 = vmatprep.subr.bf16.mxu0 0
        %258 = vmatpush1.bf16.msra.mxu0 0
        %259 = vmatprep.subr.bf16.mxu0 0
        %260 = vmatpush1.bf16.msra.mxu0 0
        %261 = vmatprep.subr.bf16.mxu0 0
        %262 = vmatpush1.bf16.msra.mxu0 0
        %263 = vmatprep.subr.bf16.mxu0 0
        %264 = vmatpush1.bf16.msra.mxu0 0
        %265 = vmatprep.subr.bf16.mxu0 0
        %266 = vmatpush1.bf16.msra.mxu0 0
        %267 = vmatprep.subr.bf16.mxu0 0
        %268 = vmatpush1.bf16.msra.mxu0 0
        %269 = vmatprep.subr.bf16.mxu0 0
        %270 = vmatpush1.bf16.msra.mxu0 0
        %271 = vmatprep.subr.bf16.mxu0 0
        %272 = vmatpush1.bf16.msra.mxu0 0
        %273 = vmatprep.subr.bf16.mxu0 0
        %274 = vmatpush1.bf16.msra.mxu0 0
        %275 = vmatprep.subr.bf16.mxu0 0
        %276 = vmatpush1.bf16.msra.mxu0 0
        %277 = vmatprep.subr.bf16.mxu0 0
        %278 = vmatpush1.bf16.msra.mxu0 0
        %279 = vmatprep.subr.bf16.mxu0 0
        %280 = vmatpush1.bf16.msra.mxu0 0
        %281 = vmatprep.mubr.bf16.mxu0 0
        %282 = vmatmul.mubr.bf16.gmra.mrb[0].mxu0 %v231
        %v283 = vpop.f32.mrb[0].mxu0
        %v284 = vadd.f32 0.0, %v283
        %v285 = vpop.f32.mrb[0].mxu0
        %v286 = vadd.f32 0.0, %v285
        %v287 = vpop.f32.mrb[0].mxu0
        %v288 = vadd.f32 0.0, %v287
        %v289 = vpop.f32.mrb[0].mxu0
        %v290 = vadd.f32 0.0, %v289
        %291 = vmatprep.mubr.bf16.mxu0 0
        %292 = vmatmul.mubr.bf16.gmra.mrb[0].mxu0 %v234
        %v293 = vpop.f32.mrb[0].mxu0
        %v294 = vadd.f32 0.0, %v293
        %v295 = vpop.f32.mrb[0].mxu0
        %v296 = vadd.f32 0.0, %v295
        %v297 = vpop.f32.mrb[0].mxu0
        %v298 = vadd.f32 0.0, %v297
        %v299 = vpop.f32.mrb[0].mxu0
        %v300 = vadd.f32 0.0, %v299
        %301 = vdwg.mxu0
        %302 = vmatprep.subr.bf16.mxu0 %v247
        %303 = vmatpush1.bf16.msra.mxu0 %v244
        %304 = vmatprep.subr.bf16.mxu0 0
        %305 = vmatpush1.bf16.msra.mxu0 0
        %306 = vmatprep.subr.bf16.mxu0 0
        %307 = vmatpush1.bf16.msra.mxu0 0
        %308 = vmatprep.subr.bf16.mxu0 0
        %309 = vmatpush1.bf16.msra.mxu0 0
        %310 = vmatprep.subr.bf16.mxu0 0
        %311 = vmatpush1.bf16.msra.mxu0 0
        %312 = vmatprep.subr.bf16.mxu0 0
        %313 = vmatpush1.bf16.msra.mxu0 0
        %314 = vmatprep.subr.bf16.mxu0 0
        %315 = vmatpush1.bf16.msra.mxu0 0
        %316 = vmatprep.subr.bf16.mxu0 0
        %317 = vmatpush1.bf16.msra.mxu0 0
        %318 = vmatprep.subr.bf16.mxu0 0
        %319 = vmatpush1.bf16.msra.mxu0 0
        %320 = vmatprep.subr.bf16.mxu0 0
        %321 = vmatpush1.bf16.msra.mxu0 0
        %322 = vmatprep.subr.bf16.mxu0 0
        %323 = vmatpush1.bf16.msra.mxu0 0
        %324 = vmatprep.subr.bf16.mxu0 0
        %325 = vmatpush1.bf16.msra.mxu0 0
        %326 = vmatprep.subr.bf16.mxu0 0
        %327 = vmatpush1.bf16.msra.mxu0 0
        %328 = vmatprep.subr.bf16.mxu0 0
        %329 = vmatpush1.bf16.msra.mxu0 0
        %330 = vmatprep.subr.bf16.mxu0 0
        %331 = vmatpush1.bf16.msra.mxu0 0
        %332 = vmatprep.subr.bf16.mxu0 0
        %333 = vmatpush1.bf16.msra.mxu0 0
        %334 = vmatprep.mubr.bf16.mxu0 0
        %335 = vmatmul.mubr.bf16.gmra.mrb[0].mxu0 %v231
        %v336 = vpop.f32.mrb[0].mxu0
        %v337 = vadd.f32 0.0, %v336
        %v338 = vpop.f32.mrb[0].mxu0
        %v339 = vadd.f32 0.0, %v338
        %v340 = vpop.f32.mrb[0].mxu0
        %v341 = vadd.f32 0.0, %v340
        %v342 = vpop.f32.mrb[0].mxu0
        %v343 = vadd.f32 0.0, %v342
        %344 = vmatprep.mubr.bf16.mxu0 0
        %345 = vmatmul.mubr.bf16.gmra.mrb[0].mxu0 %v234
        %v346 = vpop.f32.mrb[0].mxu0
        %v347 = vadd.f32 0.0, %v346
        %v348 = vpop.f32.mrb[0].mxu0
        %v349 = vadd.f32 0.0, %v348
        %v350 = vpop.f32.mrb[0].mxu0
        %v351 = vadd.f32 0.0, %v350
        %v352 = vpop.f32.mrb[0].mxu0
        %v353 = vadd.f32 0.0, %v352
        %354 = vdwg.mxu0
        %v355 = vadd.f32 %v180, %v284
        %v356 = vadd.f32 %v180, %v286
        %v357 = vadd.f32 %v180, %v337
        %v358 = vadd.f32 %v180, %v339
        %v359 = vadd.f32 %v185, %v288
        %v360 = vadd.f32 %v185, %v290
        %v361 = vadd.f32 %v185, %v341
        %v362 = vadd.f32 %v185, %v343
        %v363 = vadd.f32 %v190, %v294
        %v364 = vadd.f32 %v190, %v296
        %v365 = vadd.f32 %v190, %v347
        %v366 = vadd.f32 %v190, %v349
        %v367 = vadd.f32 %v195, %v298
        %v368 = vadd.f32 %v195, %v300
        %v369 = vadd.f32 %v195, %v351
        %v370 = vadd.f32 %v195, %v353
        %s371 = scalar_lea.vmem %s0, 16
        %v372 = vld [vmem:[%s371] sm:$0xf]
        %v373 = vld [vmem:[%s371 + $0x4] sm:$0xf]
        %v374 = vld [vmem:[%s371 + $0x8] sm:$0xf]
        %v375 = vld [vmem:[%s371 + $0xc] sm:$0xf]
        %v380 = vunpack.c.l.b16 %v372
        %v381 = vunpack.c.l.b16 %v373
        %v382 = vunpack.c.l.b16 %v374
        %v383 = vunpack.c.l.b16 %v375
        %v384 = vpack.c.b16 %v381, %v380
        %v385 = vpack.c.b16 %v383, %v382
        %v388 = vunpack.c.l.s4 1983009808
        %v389 = vunpack.c.0.s8 %v388
        %v390 = vlaneseq
        %v391 = vshrl.u32 %v390, 7
        %v392 = vsub.s32 %v389, %v391
        %v393 = vrot.slane %v172, %v392
        %394 = vrot.lane.b32.xlu0 %v219, 127
        %v395 = vpop.permute.xlu0 %394
        %396 = vrot.lane.b32.xlu0 %v227, 127
        %v397 = vpop.permute.xlu0 %396
        %398 = vrot.lane.b32.xlu0 %v226, 127
        %v399 = vpop.permute.xlu0 %398
        %400 = vrot.lane.b32.xlu0 %v228, 127
        %v401 = vpop.permute.xlu0 %400
        %402 = vrot.lane.b32.xlu0 %v393, 127
        %v403 = vpop.permute.xlu0 %402
        %vm404 = vcmask 1039360
        %v405 = vsel %vm404, %v395, %v397
        %v406 = vsel %vm404, %v397, %v399
        %v407 = vsel %vm404, %v399, %v401
        %v408 = vsel %vm404, %v401, %v403
        %v410 = vsel %vm229, %v384, 0
        %v413 = vsel %vm229, %v385, 0
        %v416 = vsel %vm236, %v405, 0
        %v419 = vsel %vm236, %v406, 0
        %v422 = vsel %vm236, %v407, 0
        %v425 = vsel %vm236, %v408, 0
        %427 = vmatprep.subr.bf16.mxu0 %v419
        %428 = vmatpush1.bf16.msra.mxu0 %v416
        %429 = vmatprep.subr.bf16.mxu0 0
        %430 = vmatpush1.bf16.msra.mxu0 0
        %431 = vmatprep.subr.bf16.mxu0 0
        %432 = vmatpush1.bf16.msra.mxu0 0
        %433 = vmatprep.subr.bf16.mxu0 0
        %434 = vmatpush1.bf16.msra.mxu0 0
        %435 = vmatprep.subr.bf16.mxu0 0
        %436 = vmatpush1.bf16.msra.mxu0 0
        %437 = vmatprep.subr.bf16.mxu0 0
        %438 = vmatpush1.bf16.msra.mxu0 0
        %439 = vmatprep.subr.bf16.mxu0 0
        %440 = vmatpush1.bf16.msra.mxu0 0
        %441 = vmatprep.subr.bf16.mxu0 0
        %442 = vmatpush1.bf16.msra.mxu0 0
        %443 = vmatprep.subr.bf16.mxu0 0
        %444 = vmatpush1.bf16.msra.mxu0 0
        %445 = vmatprep.subr.bf16.mxu0 0
        %446 = vmatpush1.bf16.msra.mxu0 0
        %447 = vmatprep.subr.bf16.mxu0 0
        %448 = vmatpush1.bf16.msra.mxu0 0
        %449 = vmatprep.subr.bf16.mxu0 0
        %450 = vmatpush1.bf16.msra.mxu0 0
        %451 = vmatprep.subr.bf16.mxu0 0
        %452 = vmatpush1.bf16.msra.mxu0 0
        %453 = vmatprep.subr.bf16.mxu0 0
        %454 = vmatpush1.bf16.msra.mxu0 0
        %455 = vmatprep.subr.bf16.mxu0 0
        %456 = vmatpush1.bf16.msra.mxu0 0
        %457 = vmatprep.subr.bf16.mxu0 0
        %458 = vmatpush1.bf16.msra.mxu0 0
        %459 = vmatprep.mubr.bf16.mxu0 0
        %460 = vmatmul.mubr.bf16.gmra.mrb[0].mxu0 %v410
        %v461 = vpop.f32.mrb[0].mxu0
        %v462 = vadd.f32 0.0, %v461
        %v463 = vpop.f32.mrb[0].mxu0
        %v464 = vadd.f32 0.0, %v463
        %v465 = vpop.f32.mrb[0].mxu0
        %v466 = vadd.f32 0.0, %v465
        %v467 = vpop.f32.mrb[0].mxu0
        %v468 = vadd.f32 0.0, %v467
        %469 = vmatprep.mubr.bf16.mxu0 0
        %470 = vmatmul.mubr.bf16.gmra.mrb[0].mxu0 %v413
        %v471 = vpop.f32.mrb[0].mxu0
        %v472 = vadd.f32 0.0, %v471
        %v473 = vpop.f32.mrb[0].mxu0
        %v474 = vadd.f32 0.0, %v473
        %v475 = vpop.f32.mrb[0].mxu0
        %v476 = vadd.f32 0.0, %v475
        %v477 = vpop.f32.mrb[0].mxu0
        %v478 = vadd.f32 0.0, %v477
        %479 = vdwg.mxu0
        %480 = vmatprep.subr.bf16.mxu0 %v425
        %481 = vmatpush1.bf16.msra.mxu0 %v422
        %482 = vmatprep.subr.bf16.mxu0 0
        %483 = vmatpush1.bf16.msra.mxu0 0
        %484 = vmatprep.subr.bf16.mxu0 0
        %485 = vmatpush1.bf16.msra.mxu0 0
        %486 = vmatprep.subr.bf16.mxu0 0
        %487 = vmatpush1.bf16.msra.mxu0 0
        %488 = vmatprep.subr.bf16.mxu0 0
        %489 = vmatpush1.bf16.msra.mxu0 0
        %490 = vmatprep.subr.bf16.mxu0 0
        %491 = vmatpush1.bf16.msra.mxu0 0
        %492 = vmatprep.subr.bf16.mxu0 0
        %493 = vmatpush1.bf16.msra.mxu0 0
        %494 = vmatprep.subr.bf16.mxu0 0
        %495 = vmatpush1.bf16.msra.mxu0 0
        %496 = vmatprep.subr.bf16.mxu0 0
        %497 = vmatpush1.bf16.msra.mxu0 0
        %498 = vmatprep.subr.bf16.mxu0 0
        %499 = vmatpush1.bf16.msra.mxu0 0
        %500 = vmatprep.subr.bf16.mxu0 0
        %501 = vmatpush1.bf16.msra.mxu0 0
        %502 = vmatprep.subr.bf16.mxu0 0
        %503 = vmatpush1.bf16.msra.mxu0 0
        %504 = vmatprep.subr.bf16.mxu0 0
        %505 = vmatpush1.bf16.msra.mxu0 0
        %506 = vmatprep.subr.bf16.mxu0 0
        %507 = vmatpush1.bf16.msra.mxu0 0
        %508 = vmatprep.subr.bf16.mxu0 0
        %509 = vmatpush1.bf16.msra.mxu0 0
        %510 = vmatprep.subr.bf16.mxu0 0
        %511 = vmatpush1.bf16.msra.mxu0 0
        %512 = vmatprep.mubr.bf16.mxu0 0
        %513 = vmatmul.mubr.bf16.gmra.mrb[0].mxu0 %v410
        %v514 = vpop.f32.mrb[0].mxu0
        %v515 = vadd.f32 0.0, %v514
        %v516 = vpop.f32.mrb[0].mxu0
        %v517 = vadd.f32 0.0, %v516
        %v518 = vpop.f32.mrb[0].mxu0
        %v519 = vadd.f32 0.0, %v518
        %v520 = vpop.f32.mrb[0].mxu0
        %v521 = vadd.f32 0.0, %v520
        %522 = vmatprep.mubr.bf16.mxu0 0
        %523 = vmatmul.mubr.bf16.gmra.mrb[0].mxu0 %v413
        %v524 = vpop.f32.mrb[0].mxu0
        %v525 = vadd.f32 0.0, %v524
        %v526 = vpop.f32.mrb[0].mxu0
        %v527 = vadd.f32 0.0, %v526
        %v528 = vpop.f32.mrb[0].mxu0
        %v529 = vadd.f32 0.0, %v528
        %v530 = vpop.f32.mrb[0].mxu0
        %v531 = vadd.f32 0.0, %v530
        %532 = vdwg.mxu0
        %v533 = vadd.f32 %v355, %v462
        %v534 = vadd.f32 %v356, %v464
        %v535 = vadd.f32 %v357, %v515
        %v536 = vadd.f32 %v358, %v517
        %v537 = vadd.f32 %v359, %v466
        %v538 = vadd.f32 %v360, %v468
        %v539 = vadd.f32 %v361, %v519
        %v540 = vadd.f32 %v362, %v521
        %v541 = vadd.f32 %v363, %v472
        %v542 = vadd.f32 %v364, %v474
        %v543 = vadd.f32 %v365, %v525
        %v544 = vadd.f32 %v366, %v527
        %v545 = vadd.f32 %v367, %v476
        %v546 = vadd.f32 %v368, %v478
        %v547 = vadd.f32 %v369, %v529
        %v548 = vadd.f32 %v370, %v531
        %s549 = scalar_lea.vmem %s0, 32
        %v550 = vld [vmem:[%s549] sm:$0xf]
        %v551 = vld [vmem:[%s549 + $0x4] sm:$0xf]
        %v552 = vld [vmem:[%s549 + $0x8] sm:$0xf]
        %v553 = vld [vmem:[%s549 + $0xc] sm:$0xf]
        %v558 = vunpack.c.l.b16 %v550
        %v559 = vunpack.c.l.b16 %v551
        %v560 = vunpack.c.l.b16 %v552
        %v561 = vunpack.c.l.b16 %v553
        %v562 = vpack.c.b16 %v559, %v558
        %v563 = vpack.c.b16 %v561, %v560
        %564 = vrot.lane.b32.xlu0 %v219, 126
        %v565 = vpop.permute.xlu0 %564
        %566 = vrot.lane.b32.xlu0 %v227, 126
        %v567 = vpop.permute.xlu0 %566
        %568 = vrot.lane.b32.xlu0 %v226, 126
        %v569 = vpop.permute.xlu0 %568
        %570 = vrot.lane.b32.xlu0 %v228, 126
        %v571 = vpop.permute.xlu0 %570
        %572 = vrot.lane.b32.xlu0 %v393, 126
        %v573 = vpop.permute.xlu0 %572
        %vm574 = vcmask 1031168
        %v575 = vsel %vm574, %v565, %v567
        %v576 = vsel %vm574, %v567, %v569
        %v577 = vsel %vm574, %v569, %v571
        %v578 = vsel %vm574, %v571, %v573
        %v580 = vsel %vm229, %v562, 0
        %v583 = vsel %vm229, %v563, 0
        %v586 = vsel %vm236, %v575, 0
        %v589 = vsel %vm236, %v576, 0
        %v592 = vsel %vm236, %v577, 0
        %v595 = vsel %vm236, %v578, 0
        %597 = vmatprep.subr.bf16.mxu0 %v589
        %598 = vmatpush1.bf16.msra.mxu0 %v586
        %599 = vmatprep.subr.bf16.mxu0 0
        %600 = vmatpush1.bf16.msra.mxu0 0
        %601 = vmatprep.subr.bf16.mxu0 0
        %602 = vmatpush1.bf16.msra.mxu0 0
        %603 = vmatprep.subr.bf16.mxu0 0
        %604 = vmatpush1.bf16.msra.mxu0 0
        %605 = vmatprep.subr.bf16.mxu0 0
        %606 = vmatpush1.bf16.msra.mxu0 0
        %607 = vmatprep.subr.bf16.mxu0 0
        %608 = vmatpush1.bf16.msra.mxu0 0
        %609 = vmatprep.subr.bf16.mxu0 0
        %610 = vmatpush1.bf16.msra.mxu0 0
        %611 = vmatprep.subr.bf16.mxu0 0
        %612 = vmatpush1.bf16.msra.mxu0 0
        %613 = vmatprep.subr.bf16.mxu0 0
        %614 = vmatpush1.bf16.msra.mxu0 0
        %615 = vmatprep.subr.bf16.mxu0 0
        %616 = vmatpush1.bf16.msra.mxu0 0
        %617 = vmatprep.subr.bf16.mxu0 0
        %618 = vmatpush1.bf16.msra.mxu0 0
        %619 = vmatprep.subr.bf16.mxu0 0
        %620 = vmatpush1.bf16.msra.mxu0 0
        %621 = vmatprep.subr.bf16.mxu0 0
        %622 = vmatpush1.bf16.msra.mxu0 0
        %623 = vmatprep.subr.bf16.mxu0 0
        %624 = vmatpush1.bf16.msra.mxu0 0
        %625 = vmatprep.subr.bf16.mxu0 0
        %626 = vmatpush1.bf16.msra.mxu0 0
        %627 = vmatprep.subr.bf16.mxu0 0
        %628 = vmatpush1.bf16.msra.mxu0 0
        %629 = vmatprep.mubr.bf16.mxu0 0
        %630 = vmatmul.mubr.bf16.gmra.mrb[0].mxu0 %v580
        %v631 = vpop.f32.mrb[0].mxu0
        %v632 = vadd.f32 0.0, %v631
        %v633 = vpop.f32.mrb[0].mxu0
        %v634 = vadd.f32 0.0, %v633
        %v635 = vpop.f32.mrb[0].mxu0
        %v636 = vadd.f32 0.0, %v635
        %v637 = vpop.f32.mrb[0].mxu0
        %v638 = vadd.f32 0.0, %v637
        %639 = vmatprep.mubr.bf16.mxu0 0
        %640 = vmatmul.mubr.bf16.gmra.mrb[0].mxu0 %v583
        %v641 = vpop.f32.mrb[0].mxu0
        %v642 = vadd.f32 0.0, %v641
        %v643 = vpop.f32.mrb[0].mxu0
        %v644 = vadd.f32 0.0, %v643
        %v645 = vpop.f32.mrb[0].mxu0
        %v646 = vadd.f32 0.0, %v645
        %v647 = vpop.f32.mrb[0].mxu0
        %v648 = vadd.f32 0.0, %v647
        %649 = vdwg.mxu0
        %650 = vmatprep.subr.bf16.mxu0 %v595
        %651 = vmatpush1.bf16.msra.mxu0 %v592
        %652 = vmatprep.subr.bf16.mxu0 0
        %653 = vmatpush1.bf16.msra.mxu0 0
        %654 = vmatprep.subr.bf16.mxu0 0
        %655 = vmatpush1.bf16.msra.mxu0 0
        %656 = vmatprep.subr.bf16.mxu0 0
        %657 = vmatpush1.bf16.msra.mxu0 0
        %658 = vmatprep.subr.bf16.mxu0 0
        %659 = vmatpush1.bf16.msra.mxu0 0
        %660 = vmatprep.subr.bf16.mxu0 0
        %661 = vmatpush1.bf16.msra.mxu0 0
        %662 = vmatprep.subr.bf16.mxu0 0
        %663 = vmatpush1.bf16.msra.mxu0 0
        %664 = vmatprep.subr.bf16.mxu0 0
        %665 = vmatpush1.bf16.msra.mxu0 0
        %666 = vmatprep.subr.bf16.mxu0 0
        %667 = vmatpush1.bf16.msra.mxu0 0
        %668 = vmatprep.subr.bf16.mxu0 0
        %669 = vmatpush1.bf16.msra.mxu0 0
        %670 = vmatprep.subr.bf16.mxu0 0
        %671 = vmatpush1.bf16.msra.mxu0 0
        %672 = vmatprep.subr.bf16.mxu0 0
        %673 = vmatpush1.bf16.msra.mxu0 0
        %674 = vmatprep.subr.bf16.mxu0 0
        %675 = vmatpush1.bf16.msra.mxu0 0
        %676 = vmatprep.subr.bf16.mxu0 0
        %677 = vmatpush1.bf16.msra.mxu0 0
        %678 = vmatprep.subr.bf16.mxu0 0
        %679 = vmatpush1.bf16.msra.mxu0 0
        %680 = vmatprep.subr.bf16.mxu0 0
        %681 = vmatpush1.bf16.msra.mxu0 0
        %682 = vmatprep.mubr.bf16.mxu0 0
        %683 = vmatmul.mubr.bf16.gmra.mrb[0].mxu0 %v580
        %v684 = vpop.f32.mrb[0].mxu0
        %v685 = vadd.f32 0.0, %v684
        %v686 = vpop.f32.mrb[0].mxu0
        %v687 = vadd.f32 0.0, %v686
        %v688 = vpop.f32.mrb[0].mxu0
        %v689 = vadd.f32 0.0, %v688
        %v690 = vpop.f32.mrb[0].mxu0
        %v691 = vadd.f32 0.0, %v690
        %692 = vmatprep.mubr.bf16.mxu0 0
        %693 = vmatmul.mubr.bf16.gmra.mrb[0].mxu0 %v583
        %v694 = vpop.f32.mrb[0].mxu0
        %v695 = vadd.f32 0.0, %v694
        %v696 = vpop.f32.mrb[0].mxu0
        %v697 = vadd.f32 0.0, %v696
        %v698 = vpop.f32.mrb[0].mxu0
        %v699 = vadd.f32 0.0, %v698
        %v700 = vpop.f32.mrb[0].mxu0
        %v701 = vadd.f32 0.0, %v700
        %702 = vdwg.mxu0
        %v703 = vadd.f32 %v533, %v632
        %v704 = vadd.f32 %v534, %v634
        %v705 = vadd.f32 %v535, %v685
        %v706 = vadd.f32 %v536, %v687
        %v707 = vadd.f32 %v537, %v636
        %v708 = vadd.f32 %v538, %v638
        %v709 = vadd.f32 %v539, %v689
        %v710 = vadd.f32 %v540, %v691
        %v711 = vadd.f32 %v541, %v642
        %v712 = vadd.f32 %v542, %v644
        %v713 = vadd.f32 %v543, %v695
        %v714 = vadd.f32 %v544, %v697
        %v715 = vadd.f32 %v545, %v646
        %v716 = vadd.f32 %v546, %v648
        %v717 = vadd.f32 %v547, %v699
        %v718 = vadd.f32 %v548, %v701
        %s719 = scalar_lea.vmem %s0, 48
        %v720 = vld [vmem:[%s719] sm:$0xf]
        %v721 = vld [vmem:[%s719 + $0x4] sm:$0xf]
        %v722 = vld [vmem:[%s719 + $0x8] sm:$0xf]
        %v723 = vld [vmem:[%s719 + $0xc] sm:$0xf]
        %v728 = vunpack.c.l.b16 %v720
        %v729 = vunpack.c.l.b16 %v721
        %v730 = vunpack.c.l.b16 %v722
        %v731 = vunpack.c.l.b16 %v723
        %v732 = vpack.c.b16 %v729, %v728
        %v733 = vpack.c.b16 %v731, %v730
        %734 = vrot.lane.b32.xlu0 %v219, 110
        %v735 = vpop.permute.xlu0 %734
        %736 = vrot.lane.b32.xlu0 %v227, 110
        %v737 = vpop.permute.xlu0 %736
        %738 = vrot.lane.b32.xlu0 %v226, 110
        %v739 = vpop.permute.xlu0 %738
        %740 = vrot.lane.b32.xlu0 %v228, 110
        %v741 = vpop.permute.xlu0 %740
        %742 = vrot.lane.b32.xlu0 %v393, 110
        %v743 = vpop.permute.xlu0 %742
        %vm744 = vcmask 900096
        %v745 = vsel %vm744, %v735, %v737
        %v746 = vsel %vm744, %v737, %v739
        %v747 = vsel %vm744, %v739, %v741
        %v748 = vsel %vm744, %v741, %v743
        %v750 = vsel %vm229, %v732, 0
        %v753 = vsel %vm229, %v733, 0
        %v756 = vsel %vm236, %v745, 0
        %v759 = vsel %vm236, %v746, 0
        %v762 = vsel %vm236, %v747, 0
        %v765 = vsel %vm236, %v748, 0
        %767 = vmatprep.subr.bf16.mxu0 %v759
        %768 = vmatpush1.bf16.msra.mxu0 %v756
        %769 = vmatprep.subr.bf16.mxu0 0
        %770 = vmatpush1.bf16.msra.mxu0 0
        %771 = vmatprep.subr.bf16.mxu0 0
        %772 = vmatpush1.bf16.msra.mxu0 0
        %773 = vmatprep.subr.bf16.mxu0 0
        %774 = vmatpush1.bf16.msra.mxu0 0
        %775 = vmatprep.subr.bf16.mxu0 0
        %776 = vmatpush1.bf16.msra.mxu0 0
        %777 = vmatprep.subr.bf16.mxu0 0
        %778 = vmatpush1.bf16.msra.mxu0 0
        %779 = vmatprep.subr.bf16.mxu0 0
        %780 = vmatpush1.bf16.msra.mxu0 0
        %781 = vmatprep.subr.bf16.mxu0 0
        %782 = vmatpush1.bf16.msra.mxu0 0
        %783 = vmatprep.subr.bf16.mxu0 0
        %784 = vmatpush1.bf16.msra.mxu0 0
        %785 = vmatprep.subr.bf16.mxu0 0
        %786 = vmatpush1.bf16.msra.mxu0 0
        %787 = vmatprep.subr.bf16.mxu0 0
        %788 = vmatpush1.bf16.msra.mxu0 0
        %789 = vmatprep.subr.bf16.mxu0 0
        %790 = vmatpush1.bf16.msra.mxu0 0
        %791 = vmatprep.subr.bf16.mxu0 0
        %792 = vmatpush1.bf16.msra.mxu0 0
        %793 = vmatprep.subr.bf16.mxu0 0
        %794 = vmatpush1.bf16.msra.mxu0 0
        %795 = vmatprep.subr.bf16.mxu0 0
        %796 = vmatpush1.bf16.msra.mxu0 0
        %797 = vmatprep.subr.bf16.mxu0 0
        %798 = vmatpush1.bf16.msra.mxu0 0
        %799 = vmatprep.mubr.bf16.mxu0 0
        %800 = vmatmul.mubr.bf16.gmra.mrb[0].mxu0 %v750
        %v801 = vpop.f32.mrb[0].mxu0
        %v802 = vadd.f32 0.0, %v801
        %v803 = vpop.f32.mrb[0].mxu0
        %v804 = vadd.f32 0.0, %v803
        %v805 = vpop.f32.mrb[0].mxu0
        %v806 = vadd.f32 0.0, %v805
        %v807 = vpop.f32.mrb[0].mxu0
        %v808 = vadd.f32 0.0, %v807
        %809 = vmatprep.mubr.bf16.mxu0 0
        %810 = vmatmul.mubr.bf16.gmra.mrb[0].mxu0 %v753
        %v811 = vpop.f32.mrb[0].mxu0
        %v812 = vadd.f32 0.0, %v811
        %v813 = vpop.f32.mrb[0].mxu0
        %v814 = vadd.f32 0.0, %v813
        %v815 = vpop.f32.mrb[0].mxu0
        %v816 = vadd.f32 0.0, %v815
        %v817 = vpop.f32.mrb[0].mxu0
        %v818 = vadd.f32 0.0, %v817
        %819 = vdwg.mxu0
        %820 = vmatprep.subr.bf16.mxu0 %v765
        %821 = vmatpush1.bf16.msra.mxu0 %v762
        %822 = vmatprep.subr.bf16.mxu0 0
        %823 = vmatpush1.bf16.msra.mxu0 0
        %824 = vmatprep.subr.bf16.mxu0 0
        %825 = vmatpush1.bf16.msra.mxu0 0
        %826 = vmatprep.subr.bf16.mxu0 0
        %827 = vmatpush1.bf16.msra.mxu0 0
        %828 = vmatprep.subr.bf16.mxu0 0
        %829 = vmatpush1.bf16.msra.mxu0 0
        %830 = vmatprep.subr.bf16.mxu0 0
        %831 = vmatpush1.bf16.msra.mxu0 0
        %832 = vmatprep.subr.bf16.mxu0 0
        %833 = vmatpush1.bf16.msra.mxu0 0
        %834 = vmatprep.subr.bf16.mxu0 0
        %835 = vmatpush1.bf16.msra.mxu0 0
        %836 = vmatprep.subr.bf16.mxu0 0
        %837 = vmatpush1.bf16.msra.mxu0 0
        %838 = vmatprep.subr.bf16.mxu0 0
        %839 = vmatpush1.bf16.msra.mxu0 0
        %840 = vmatprep.subr.bf16.mxu0 0
        %841 = vmatpush1.bf16.msra.mxu0 0
        %842 = vmatprep.subr.bf16.mxu0 0
        %843 = vmatpush1.bf16.msra.mxu0 0
        %844 = vmatprep.subr.bf16.mxu0 0
        %845 = vmatpush1.bf16.msra.mxu0 0
        %846 = vmatprep.subr.bf16.mxu0 0
        %847 = vmatpush1.bf16.msra.mxu0 0
        %848 = vmatprep.subr.bf16.mxu0 0
        %849 = vmatpush1.bf16.msra.mxu0 0
        %850 = vmatprep.subr.bf16.mxu0 0
        %851 = vmatpush1.bf16.msra.mxu0 0
        %852 = vmatprep.mubr.bf16.mxu0 0
        %853 = vmatmul.mubr.bf16.gmra.mrb[0].mxu0 %v750
        %v854 = vpop.f32.mrb[0].mxu0
        %v855 = vadd.f32 0.0, %v854
        %v856 = vpop.f32.mrb[0].mxu0
        %v857 = vadd.f32 0.0, %v856
        %v858 = vpop.f32.mrb[0].mxu0
        %v859 = vadd.f32 0.0, %v858
        %v860 = vpop.f32.mrb[0].mxu0
        %v861 = vadd.f32 0.0, %v860
        %862 = vmatprep.mubr.bf16.mxu0 0
        %863 = vmatmul.mubr.bf16.gmra.mrb[0].mxu0 %v753
        %v864 = vpop.f32.mrb[0].mxu0
        %v865 = vadd.f32 0.0, %v864
        %v866 = vpop.f32.mrb[0].mxu0
        %v867 = vadd.f32 0.0, %v866
        %v868 = vpop.f32.mrb[0].mxu0
        %v869 = vadd.f32 0.0, %v868
        %v870 = vpop.f32.mrb[0].mxu0
        %v871 = vadd.f32 0.0, %v870
        %872 = vdwg.mxu0
        %v873 = vadd.f32 %v703, %v802
        %v874 = vadd.f32 %v704, %v804
        %v875 = vadd.f32 %v705, %v855
        %v876 = vadd.f32 %v706, %v857
        %v877 = vadd.f32 %v707, %v806
        %v878 = vadd.f32 %v708, %v808
        %v879 = vadd.f32 %v709, %v859
        %v880 = vadd.f32 %v710, %v861
        %v881 = vadd.f32 %v711, %v812
        %v882 = vadd.f32 %v712, %v814
        %v883 = vadd.f32 %v713, %v865
        %v884 = vadd.f32 %v714, %v867
        %v885 = vadd.f32 %v715, %v816
        %v886 = vadd.f32 %v716, %v818
        %v887 = vadd.f32 %v717, %v869
        %v888 = vadd.f32 %v718, %v871
        %s889 = scalar_lea.vmem %s0, 64
        %v890 = vld [vmem:[%s889] sm:$0xf]
        %v891 = vld [vmem:[%s889 + $0x4] sm:$0xf]
        %v892 = vld [vmem:[%s889 + $0x8] sm:$0xf]
        %v893 = vld [vmem:[%s889 + $0xc] sm:$0xf]
        %v898 = vunpack.c.l.b16 %v890
        %v899 = vunpack.c.l.b16 %v891
        %v900 = vunpack.c.l.b16 %v892
        %v901 = vunpack.c.l.b16 %v893
        %v902 = vpack.c.b16 %v899, %v898
        %v903 = vpack.c.b16 %v901, %v900
        %904 = vrot.lane.b32.xlu0 %v219, 109
        %v905 = vpop.permute.xlu0 %904
        %906 = vrot.lane.b32.xlu0 %v227, 109
        %v907 = vpop.permute.xlu0 %906
        %908 = vrot.lane.b32.xlu0 %v226, 109
        %v909 = vpop.permute.xlu0 %908
        %910 = vrot.lane.b32.xlu0 %v228, 109
        %v911 = vpop.permute.xlu0 %910
        %912 = vrot.lane.b32.xlu0 %v393, 109
        %v913 = vpop.permute.xlu0 %912
        %vm914 = vcmask 891904
        %v915 = vsel %vm914, %v905, %v907
        %v916 = vsel %vm914, %v907, %v909
        %v917 = vsel %vm914, %v909, %v911
        %v918 = vsel %vm914, %v911, %v913
        %v920 = vsel %vm229, %v902, 0
        %v923 = vsel %vm229, %v903, 0
        %v926 = vsel %vm236, %v915, 0
        %v929 = vsel %vm236, %v916, 0
        %v932 = vsel %vm236, %v917, 0
        %v935 = vsel %vm236, %v918, 0
        %937 = vmatprep.subr.bf16.mxu0 %v929
        %938 = vmatpush1.bf16.msra.mxu0 %v926
        %939 = vmatprep.subr.bf16.mxu0 0
        %940 = vmatpush1.bf16.msra.mxu0 0
        %941 = vmatprep.subr.bf16.mxu0 0
        %942 = vmatpush1.bf16.msra.mxu0 0
        %943 = vmatprep.subr.bf16.mxu0 0
        %944 = vmatpush1.bf16.msra.mxu0 0
        %945 = vmatprep.subr.bf16.mxu0 0
        %946 = vmatpush1.bf16.msra.mxu0 0
        %947 = vmatprep.subr.bf16.mxu0 0
        %948 = vmatpush1.bf16.msra.mxu0 0
        %949 = vmatprep.subr.bf16.mxu0 0
        %950 = vmatpush1.bf16.msra.mxu0 0
        %951 = vmatprep.subr.bf16.mxu0 0
        %952 = vmatpush1.bf16.msra.mxu0 0
        %953 = vmatprep.subr.bf16.mxu0 0
        %954 = vmatpush1.bf16.msra.mxu0 0
        %955 = vmatprep.subr.bf16.mxu0 0
        %956 = vmatpush1.bf16.msra.mxu0 0
        %957 = vmatprep.subr.bf16.mxu0 0
        %958 = vmatpush1.bf16.msra.mxu0 0
        %959 = vmatprep.subr.bf16.mxu0 0
        %960 = vmatpush1.bf16.msra.mxu0 0
        %961 = vmatprep.subr.bf16.mxu0 0
        %962 = vmatpush1.bf16.msra.mxu0 0
        %963 = vmatprep.subr.bf16.mxu0 0
        %964 = vmatpush1.bf16.msra.mxu0 0
        %965 = vmatprep.subr.bf16.mxu0 0
        %966 = vmatpush1.bf16.msra.mxu0 0
        %967 = vmatprep.subr.bf16.mxu0 0
        %968 = vmatpush1.bf16.msra.mxu0 0
        %969 = vmatprep.mubr.bf16.mxu0 0
        %970 = vmatmul.mubr.bf16.gmra.mrb[0].mxu0 %v920
        %v971 = vpop.f32.mrb[0].mxu0
        %v972 = vadd.f32 0.0, %v971
        %v973 = vpop.f32.mrb[0].mxu0
        %v974 = vadd.f32 0.0, %v973
        %v975 = vpop.f32.mrb[0].mxu0
        %v976 = vadd.f32 0.0, %v975
        %v977 = vpop.f32.mrb[0].mxu0
        %v978 = vadd.f32 0.0, %v977
        %979 = vmatprep.mubr.bf16.mxu0 0
        %980 = vmatmul.mubr.bf16.gmra.mrb[0].mxu0 %v923
        %v981 = vpop.f32.mrb[0].mxu0
        %v982 = vadd.f32 0.0, %v981
        %v983 = vpop.f32.mrb[0].mxu0
        %v984 = vadd.f32 0.0, %v983
        %v985 = vpop.f32.mrb[0].mxu0
        %v986 = vadd.f32 0.0, %v985
        %v987 = vpop.f32.mrb[0].mxu0
        %v988 = vadd.f32 0.0, %v987
        %989 = vdwg.mxu0
        %990 = vmatprep.subr.bf16.mxu0 %v935
        %991 = vmatpush1.bf16.msra.mxu0 %v932
        %992 = vmatprep.subr.bf16.mxu0 0
        %993 = vmatpush1.bf16.msra.mxu0 0
        %994 = vmatprep.subr.bf16.mxu0 0
        %995 = vmatpush1.bf16.msra.mxu0 0
        %996 = vmatprep.subr.bf16.mxu0 0
        %997 = vmatpush1.bf16.msra.mxu0 0
        %998 = vmatprep.subr.bf16.mxu0 0
        %999 = vmatpush1.bf16.msra.mxu0 0
        %1000 = vmatprep.subr.bf16.mxu0 0
        %1001 = vmatpush1.bf16.msra.mxu0 0
        %1002 = vmatprep.subr.bf16.mxu0 0
        %1003 = vmatpush1.bf16.msra.mxu0 0
        %1004 = vmatprep.subr.bf16.mxu0 0
        %1005 = vmatpush1.bf16.msra.mxu0 0
        %1006 = vmatprep.subr.bf16.mxu0 0
        %1007 = vmatpush1.bf16.msra.mxu0 0
        %1008 = vmatprep.subr.bf16.mxu0 0
        %1009 = vmatpush1.bf16.msra.mxu0 0
        %1010 = vmatprep.subr.bf16.mxu0 0
        %1011 = vmatpush1.bf16.msra.mxu0 0
        %1012 = vmatprep.subr.bf16.mxu0 0
        %1013 = vmatpush1.bf16.msra.mxu0 0
        %1014 = vmatprep.subr.bf16.mxu0 0
        %1015 = vmatpush1.bf16.msra.mxu0 0
        %1016 = vmatprep.subr.bf16.mxu0 0
        %1017 = vmatpush1.bf16.msra.mxu0 0
        %1018 = vmatprep.subr.bf16.mxu0 0
        %1019 = vmatpush1.bf16.msra.mxu0 0
        %1020 = vmatprep.subr.bf16.mxu0 0
        %1021 = vmatpush1.bf16.msra.mxu0 0
        %1022 = vmatprep.mubr.bf16.mxu0 0
        %1023 = vmatmul.mubr.bf16.gmra.mrb[0].mxu0 %v920
        %v1024 = vpop.f32.mrb[0].mxu0
        %v1025 = vadd.f32 0.0, %v1024
        %v1026 = vpop.f32.mrb[0].mxu0
        %v1027 = vadd.f32 0.0, %v1026
        %v1028 = vpop.f32.mrb[0].mxu0
        %v1029 = vadd.f32 0.0, %v1028
        %v1030 = vpop.f32.mrb[0].mxu0
        %v1031 = vadd.f32 0.0, %v1030
        %1032 = vmatprep.mubr.bf16.mxu0 0
        %1033 = vmatmul.mubr.bf16.gmra.mrb[0].mxu0 %v923
        %v1034 = vpop.f32.mrb[0].mxu0
        %v1035 = vadd.f32 0.0, %v1034
        %v1036 = vpop.f32.mrb[0].mxu0
        %v1037 = vadd.f32 0.0, %v1036
        %v1038 = vpop.f32.mrb[0].mxu0
        %v1039 = vadd.f32 0.0, %v1038
        %v1040 = vpop.f32.mrb[0].mxu0
        %v1041 = vadd.f32 0.0, %v1040
        %1042 = vdwg.mxu0
        %v1043 = vadd.f32 %v873, %v972
        %v1044 = vadd.f32 %v874, %v974
        %v1045 = vadd.f32 %v875, %v1025
        %v1046 = vadd.f32 %v876, %v1027
        %v1047 = vadd.f32 %v877, %v976
        %v1048 = vadd.f32 %v878, %v978
        %v1049 = vadd.f32 %v879, %v1029
        %v1050 = vadd.f32 %v880, %v1031
        %v1051 = vadd.f32 %v881, %v982
        %v1052 = vadd.f32 %v882, %v984
        %v1053 = vadd.f32 %v883, %v1035
        %v1054 = vadd.f32 %v884, %v1037
        %v1055 = vadd.f32 %v885, %v986
        %v1056 = vadd.f32 %v886, %v988
        %v1057 = vadd.f32 %v887, %v1039
        %v1058 = vadd.f32 %v888, %v1041
        %s1059 = scalar_lea.vmem %s0, 80
        %v1060 = vld [vmem:[%s1059] sm:$0xf]
        %v1061 = vld [vmem:[%s1059 + $0x4] sm:$0xf]
        %v1062 = vld [vmem:[%s1059 + $0x8] sm:$0xf]
        %v1063 = vld [vmem:[%s1059 + $0xc] sm:$0xf]
        %v1068 = vunpack.c.l.b16 %v1060
        %v1069 = vunpack.c.l.b16 %v1061
        %v1070 = vunpack.c.l.b16 %v1062
        %v1071 = vunpack.c.l.b16 %v1063
        %v1072 = vpack.c.b16 %v1069, %v1068
        %v1073 = vpack.c.b16 %v1071, %v1070
        %1074 = vrot.lane.b32.xlu0 %v219, 108
        %v1075 = vpop.permute.xlu0 %1074
        %1076 = vrot.lane.b32.xlu0 %v227, 108
        %v1077 = vpop.permute.xlu0 %1076
        %1078 = vrot.lane.b32.xlu0 %v226, 108
        %v1079 = vpop.permute.xlu0 %1078
        %1080 = vrot.lane.b32.xlu0 %v228, 108
        %v1081 = vpop.permute.xlu0 %1080
        %1082 = vrot.lane.b32.xlu0 %v393, 108
        %v1083 = vpop.permute.xlu0 %1082
        %vm1084 = vcmask 883712
        %v1085 = vsel %vm1084, %v1075, %v1077
        %v1086 = vsel %vm1084, %v1077, %v1079
        %v1087 = vsel %vm1084, %v1079, %v1081
        %v1088 = vsel %vm1084, %v1081, %v1083
        %v1090 = vsel %vm229, %v1072, 0
        %v1093 = vsel %vm229, %v1073, 0
        %v1096 = vsel %vm236, %v1085, 0
        %v1099 = vsel %vm236, %v1086, 0
        %v1102 = vsel %vm236, %v1087, 0
        %v1105 = vsel %vm236, %v1088, 0
        %1107 = vmatprep.subr.bf16.mxu0 %v1099
        %1108 = vmatpush1.bf16.msra.mxu0 %v1096
        %1109 = vmatprep.subr.bf16.mxu0 0
        %1110 = vmatpush1.bf16.msra.mxu0 0
        %1111 = vmatprep.subr.bf16.mxu0 0
        %1112 = vmatpush1.bf16.msra.mxu0 0
        %1113 = vmatprep.subr.bf16.mxu0 0
        %1114 = vmatpush1.bf16.msra.mxu0 0
        %1115 = vmatprep.subr.bf16.mxu0 0
        %1116 = vmatpush1.bf16.msra.mxu0 0
        %1117 = vmatprep.subr.bf16.mxu0 0
        %1118 = vmatpush1.bf16.msra.mxu0 0
        %1119 = vmatprep.subr.bf16.mxu0 0
        %1120 = vmatpush1.bf16.msra.mxu0 0
        %1121 = vmatprep.subr.bf16.mxu0 0
        %1122 = vmatpush1.bf16.msra.mxu0 0
        %1123 = vmatprep.subr.bf16.mxu0 0
        %1124 = vmatpush1.bf16.msra.mxu0 0
        %1125 = vmatprep.subr.bf16.mxu0 0
        %1126 = vmatpush1.bf16.msra.mxu0 0
        %1127 = vmatprep.subr.bf16.mxu0 0
        %1128 = vmatpush1.bf16.msra.mxu0 0
        %1129 = vmatprep.subr.bf16.mxu0 0
        %1130 = vmatpush1.bf16.msra.mxu0 0
        %1131 = vmatprep.subr.bf16.mxu0 0
        %1132 = vmatpush1.bf16.msra.mxu0 0
        %1133 = vmatprep.subr.bf16.mxu0 0
        %1134 = vmatpush1.bf16.msra.mxu0 0
        %1135 = vmatprep.subr.bf16.mxu0 0
        %1136 = vmatpush1.bf16.msra.mxu0 0
        %1137 = vmatprep.subr.bf16.mxu0 0
        %1138 = vmatpush1.bf16.msra.mxu0 0
        %1139 = vmatprep.mubr.bf16.mxu0 0
        %1140 = vmatmul.mubr.bf16.gmra.mrb[0].mxu0 %v1090
        %v1141 = vpop.f32.mrb[0].mxu0
        %v1142 = vadd.f32 0.0, %v1141
        %v1143 = vpop.f32.mrb[0].mxu0
        %v1144 = vadd.f32 0.0, %v1143
        %v1145 = vpop.f32.mrb[0].mxu0
        %v1146 = vadd.f32 0.0, %v1145
        %v1147 = vpop.f32.mrb[0].mxu0
        %v1148 = vadd.f32 0.0, %v1147
        %1149 = vmatprep.mubr.bf16.mxu0 0
        %1150 = vmatmul.mubr.bf16.gmra.mrb[0].mxu0 %v1093
        %v1151 = vpop.f32.mrb[0].mxu0
        %v1152 = vadd.f32 0.0, %v1151
        %v1153 = vpop.f32.mrb[0].mxu0
        %v1154 = vadd.f32 0.0, %v1153
        %v1155 = vpop.f32.mrb[0].mxu0
        %v1156 = vadd.f32 0.0, %v1155
        %v1157 = vpop.f32.mrb[0].mxu0
        %v1158 = vadd.f32 0.0, %v1157
        %1159 = vdwg.mxu0
        %1160 = vmatprep.subr.bf16.mxu0 %v1105
        %1161 = vmatpush1.bf16.msra.mxu0 %v1102
        %1162 = vmatprep.subr.bf16.mxu0 0
        %1163 = vmatpush1.bf16.msra.mxu0 0
        %1164 = vmatprep.subr.bf16.mxu0 0
        %1165 = vmatpush1.bf16.msra.mxu0 0
        %1166 = vmatprep.subr.bf16.mxu0 0
        %1167 = vmatpush1.bf16.msra.mxu0 0
        %1168 = vmatprep.subr.bf16.mxu0 0
        %1169 = vmatpush1.bf16.msra.mxu0 0
        %1170 = vmatprep.subr.bf16.mxu0 0
        %1171 = vmatpush1.bf16.msra.mxu0 0
        %1172 = vmatprep.subr.bf16.mxu0 0
        %1173 = vmatpush1.bf16.msra.mxu0 0
        %1174 = vmatprep.subr.bf16.mxu0 0
        %1175 = vmatpush1.bf16.msra.mxu0 0
        %1176 = vmatprep.subr.bf16.mxu0 0
        %1177 = vmatpush1.bf16.msra.mxu0 0
        %1178 = vmatprep.subr.bf16.mxu0 0
        %1179 = vmatpush1.bf16.msra.mxu0 0
        %1180 = vmatprep.subr.bf16.mxu0 0
        %1181 = vmatpush1.bf16.msra.mxu0 0
        %1182 = vmatprep.subr.bf16.mxu0 0
        %1183 = vmatpush1.bf16.msra.mxu0 0
        %1184 = vmatprep.subr.bf16.mxu0 0
        %1185 = vmatpush1.bf16.msra.mxu0 0
        %1186 = vmatprep.subr.bf16.mxu0 0
        %1187 = vmatpush1.bf16.msra.mxu0 0
        %1188 = vmatprep.subr.bf16.mxu0 0
        %1189 = vmatpush1.bf16.msra.mxu0 0
        %1190 = vmatprep.subr.bf16.mxu0 0
        %1191 = vmatpush1.bf16.msra.mxu0 0
        %1192 = vmatprep.mubr.bf16.mxu0 0
        %1193 = vmatmul.mubr.bf16.gmra.mrb[0].mxu0 %v1090
        %v1194 = vpop.f32.mrb[0].mxu0
        %v1195 = vadd.f32 0.0, %v1194
        %v1196 = vpop.f32.mrb[0].mxu0
        %v1197 = vadd.f32 0.0, %v1196
        %v1198 = vpop.f32.mrb[0].mxu0
        %v1199 = vadd.f32 0.0, %v1198
        %v1200 = vpop.f32.mrb[0].mxu0
        %v1201 = vadd.f32 0.0, %v1200
        %1202 = vmatprep.mubr.bf16.mxu0 0
        %1203 = vmatmul.mubr.bf16.gmra.mrb[0].mxu0 %v1093
        %v1204 = vpop.f32.mrb[0].mxu0
        %v1205 = vadd.f32 0.0, %v1204
        %v1206 = vpop.f32.mrb[0].mxu0
        %v1207 = vadd.f32 0.0, %v1206
        %v1208 = vpop.f32.mrb[0].mxu0
        %v1209 = vadd.f32 0.0, %v1208
        %v1210 = vpop.f32.mrb[0].mxu0
        %v1211 = vadd.f32 0.0, %v1210
        %1212 = vdwg.mxu0
        %v1213 = vadd.f32 %v1043, %v1142
        %v1214 = vadd.f32 %v1044, %v1144
        %v1215 = vadd.f32 %v1045, %v1195
        %v1216 = vadd.f32 %v1046, %v1197
        %v1217 = vadd.f32 %v1047, %v1146
        %v1218 = vadd.f32 %v1048, %v1148
        %v1219 = vadd.f32 %v1049, %v1199
        %v1220 = vadd.f32 %v1050, %v1201
        %v1221 = vadd.f32 %v1051, %v1152
        %v1222 = vadd.f32 %v1052, %v1154
        %v1223 = vadd.f32 %v1053, %v1205
        %v1224 = vadd.f32 %v1054, %v1207
        %v1225 = vadd.f32 %v1055, %v1156
        %v1226 = vadd.f32 %v1056, %v1158
        %v1227 = vadd.f32 %v1057, %v1209
        %v1228 = vadd.f32 %v1058, %v1211
        %s1229 = scalar_lea.vmem %s0, 96
        %v1230 = vld [vmem:[%s1229] sm:$0xf]
        %v1231 = vld [vmem:[%s1229 + $0x4] sm:$0xf]
        %v1232 = vld [vmem:[%s1229 + $0x8] sm:$0xf]
        %v1233 = vld [vmem:[%s1229 + $0xc] sm:$0xf]
        %v1238 = vunpack.c.l.b16 %v1230
        %v1239 = vunpack.c.l.b16 %v1231
        %v1240 = vunpack.c.l.b16 %v1232
        %v1241 = vunpack.c.l.b16 %v1233
        %v1242 = vpack.c.b16 %v1239, %v1238
        %v1243 = vpack.c.b16 %v1241, %v1240
        %1244 = vrot.lane.b32.xlu0 %v219, 92
        %v1245 = vpop.permute.xlu0 %1244
        %1246 = vrot.lane.b32.xlu0 %v227, 92
        %v1247 = vpop.permute.xlu0 %1246
        %1248 = vrot.lane.b32.xlu0 %v226, 92
        %v1249 = vpop.permute.xlu0 %1248
        %1250 = vrot.lane.b32.xlu0 %v228, 92
        %v1251 = vpop.permute.xlu0 %1250
        %1252 = vrot.lane.b32.xlu0 %v393, 92
        %v1253 = vpop.permute.xlu0 %1252
        %vm1254 = vcmask 752640
        %v1255 = vsel %vm1254, %v1245, %v1247
        %v1256 = vsel %vm1254, %v1247, %v1249
        %v1257 = vsel %vm1254, %v1249, %v1251
        %v1258 = vsel %vm1254, %v1251, %v1253
        %v1260 = vsel %vm229, %v1242, 0
        %v1263 = vsel %vm229, %v1243, 0
        %v1266 = vsel %vm236, %v1255, 0
        %v1269 = vsel %vm236, %v1256, 0
        %v1272 = vsel %vm236, %v1257, 0
        %v1275 = vsel %vm236, %v1258, 0
        %1277 = vmatprep.subr.bf16.mxu0 %v1269
        %1278 = vmatpush1.bf16.msra.mxu0 %v1266
        %1279 = vmatprep.subr.bf16.mxu0 0
        %1280 = vmatpush1.bf16.msra.mxu0 0
        %1281 = vmatprep.subr.bf16.mxu0 0
        %1282 = vmatpush1.bf16.msra.mxu0 0
        %1283 = vmatprep.subr.bf16.mxu0 0
        %1284 = vmatpush1.bf16.msra.mxu0 0
        %1285 = vmatprep.subr.bf16.mxu0 0
        %1286 = vmatpush1.bf16.msra.mxu0 0
        %1287 = vmatprep.subr.bf16.mxu0 0
        %1288 = vmatpush1.bf16.msra.mxu0 0
        %1289 = vmatprep.subr.bf16.mxu0 0
        %1290 = vmatpush1.bf16.msra.mxu0 0
        %1291 = vmatprep.subr.bf16.mxu0 0
        %1292 = vmatpush1.bf16.msra.mxu0 0
        %1293 = vmatprep.subr.bf16.mxu0 0
        %1294 = vmatpush1.bf16.msra.mxu0 0
        %1295 = vmatprep.subr.bf16.mxu0 0
        %1296 = vmatpush1.bf16.msra.mxu0 0
        %1297 = vmatprep.subr.bf16.mxu0 0
        %1298 = vmatpush1.bf16.msra.mxu0 0
        %1299 = vmatprep.subr.bf16.mxu0 0
        %1300 = vmatpush1.bf16.msra.mxu0 0
        %1301 = vmatprep.subr.bf16.mxu0 0
        %1302 = vmatpush1.bf16.msra.mxu0 0
        %1303 = vmatprep.subr.bf16.mxu0 0
        %1304 = vmatpush1.bf16.msra.mxu0 0
        %1305 = vmatprep.subr.bf16.mxu0 0
        %1306 = vmatpush1.bf16.msra.mxu0 0
        %1307 = vmatprep.subr.bf16.mxu0 0
        %1308 = vmatpush1.bf16.msra.mxu0 0
        %1309 = vmatprep.mubr.bf16.mxu0 0
        %1310 = vmatmul.mubr.bf16.gmra.mrb[0].mxu0 %v1260
        %v1311 = vpop.f32.mrb[0].mxu0
        %v1312 = vadd.f32 0.0, %v1311
        %v1313 = vpop.f32.mrb[0].mxu0
        %v1314 = vadd.f32 0.0, %v1313
        %v1315 = vpop.f32.mrb[0].mxu0
        %v1316 = vadd.f32 0.0, %v1315
        %v1317 = vpop.f32.mrb[0].mxu0
        %v1318 = vadd.f32 0.0, %v1317
        %1319 = vmatprep.mubr.bf16.mxu0 0
        %1320 = vmatmul.mubr.bf16.gmra.mrb[0].mxu0 %v1263
        %v1321 = vpop.f32.mrb[0].mxu0
        %v1322 = vadd.f32 0.0, %v1321
        %v1323 = vpop.f32.mrb[0].mxu0
        %v1324 = vadd.f32 0.0, %v1323
        %v1325 = vpop.f32.mrb[0].mxu0
        %v1326 = vadd.f32 0.0, %v1325
        %v1327 = vpop.f32.mrb[0].mxu0
        %v1328 = vadd.f32 0.0, %v1327
        %1329 = vdwg.mxu0
        %1330 = vmatprep.subr.bf16.mxu0 %v1275
        %1331 = vmatpush1.bf16.msra.mxu0 %v1272
        %1332 = vmatprep.subr.bf16.mxu0 0
        %1333 = vmatpush1.bf16.msra.mxu0 0
        %1334 = vmatprep.subr.bf16.mxu0 0
        %1335 = vmatpush1.bf16.msra.mxu0 0
        %1336 = vmatprep.subr.bf16.mxu0 0
        %1337 = vmatpush1.bf16.msra.mxu0 0
        %1338 = vmatprep.subr.bf16.mxu0 0
        %1339 = vmatpush1.bf16.msra.mxu0 0
        %1340 = vmatprep.subr.bf16.mxu0 0
        %1341 = vmatpush1.bf16.msra.mxu0 0
        %1342 = vmatprep.subr.bf16.mxu0 0
        %1343 = vmatpush1.bf16.msra.mxu0 0
        %1344 = vmatprep.subr.bf16.mxu0 0
        %1345 = vmatpush1.bf16.msra.mxu0 0
        %1346 = vmatprep.subr.bf16.mxu0 0
        %1347 = vmatpush1.bf16.msra.mxu0 0
        %1348 = vmatprep.subr.bf16.mxu0 0
        %1349 = vmatpush1.bf16.msra.mxu0 0
        %1350 = vmatprep.subr.bf16.mxu0 0
        %1351 = vmatpush1.bf16.msra.mxu0 0
        %1352 = vmatprep.subr.bf16.mxu0 0
        %1353 = vmatpush1.bf16.msra.mxu0 0
        %1354 = vmatprep.subr.bf16.mxu0 0
        %1355 = vmatpush1.bf16.msra.mxu0 0
        %1356 = vmatprep.subr.bf16.mxu0 0
        %1357 = vmatpush1.bf16.msra.mxu0 0
        %1358 = vmatprep.subr.bf16.mxu0 0
        %1359 = vmatpush1.bf16.msra.mxu0 0
        %1360 = vmatprep.subr.bf16.mxu0 0
        %1361 = vmatpush1.bf16.msra.mxu0 0
        %1362 = vmatprep.mubr.bf16.mxu0 0
        %1363 = vmatmul.mubr.bf16.gmra.mrb[0].mxu0 %v1260
        %v1364 = vpop.f32.mrb[0].mxu0
        %v1365 = vadd.f32 0.0, %v1364
        %v1366 = vpop.f32.mrb[0].mxu0
        %v1367 = vadd.f32 0.0, %v1366
        %v1368 = vpop.f32.mrb[0].mxu0
        %v1369 = vadd.f32 0.0, %v1368
        %v1370 = vpop.f32.mrb[0].mxu0
        %v1371 = vadd.f32 0.0, %v1370
        %1372 = vmatprep.mubr.bf16.mxu0 0
        %1373 = vmatmul.mubr.bf16.gmra.mrb[0].mxu0 %v1263
        %v1374 = vpop.f32.mrb[0].mxu0
        %v1375 = vadd.f32 0.0, %v1374
        %v1376 = vpop.f32.mrb[0].mxu0
        %v1377 = vadd.f32 0.0, %v1376
        %v1378 = vpop.f32.mrb[0].mxu0
        %v1379 = vadd.f32 0.0, %v1378
        %v1380 = vpop.f32.mrb[0].mxu0
        %v1381 = vadd.f32 0.0, %v1380
        %1382 = vdwg.mxu0
        %v1383 = vadd.f32 %v1213, %v1312
        %v1384 = vadd.f32 %v1214, %v1314
        %v1385 = vadd.f32 %v1215, %v1365
        %v1386 = vadd.f32 %v1216, %v1367
        %v1387 = vadd.f32 %v1217, %v1316
        %v1388 = vadd.f32 %v1218, %v1318
        %v1389 = vadd.f32 %v1219, %v1369
        %v1390 = vadd.f32 %v1220, %v1371
        %v1391 = vadd.f32 %v1221, %v1322
        %v1392 = vadd.f32 %v1222, %v1324
        %v1393 = vadd.f32 %v1223, %v1375
        %v1394 = vadd.f32 %v1224, %v1377
        %v1395 = vadd.f32 %v1225, %v1326
        %v1396 = vadd.f32 %v1226, %v1328
        %v1397 = vadd.f32 %v1227, %v1379
        %v1398 = vadd.f32 %v1228, %v1381
        %s1399 = scalar_lea.vmem %s0, 112
        %v1400 = vld [vmem:[%s1399] sm:$0xf]
        %v1401 = vld [vmem:[%s1399 + $0x4] sm:$0xf]
        %v1402 = vld [vmem:[%s1399 + $0x8] sm:$0xf]
        %v1403 = vld [vmem:[%s1399 + $0xc] sm:$0xf]
        %v1408 = vunpack.c.l.b16 %v1400
        %v1409 = vunpack.c.l.b16 %v1401
        %v1410 = vunpack.c.l.b16 %v1402
        %v1411 = vunpack.c.l.b16 %v1403
        %v1412 = vpack.c.b16 %v1409, %v1408
        %v1413 = vpack.c.b16 %v1411, %v1410
        %1414 = vrot.lane.b32.xlu0 %v219, 91
        %v1415 = vpop.permute.xlu0 %1414
        %1416 = vrot.lane.b32.xlu0 %v227, 91
        %v1417 = vpop.permute.xlu0 %1416
        %1418 = vrot.lane.b32.xlu0 %v226, 91
        %v1419 = vpop.permute.xlu0 %1418
        %1420 = vrot.lane.b32.xlu0 %v228, 91
        %v1421 = vpop.permute.xlu0 %1420
        %1422 = vrot.lane.b32.xlu0 %v393, 91
        %v1423 = vpop.permute.xlu0 %1422
        %vm1424 = vcmask 744448
        %v1425 = vsel %vm1424, %v1415, %v1417
        %v1426 = vsel %vm1424, %v1417, %v1419
        %v1427 = vsel %vm1424, %v1419, %v1421
        %v1428 = vsel %vm1424, %v1421, %v1423
        %v1430 = vsel %vm229, %v1412, 0
        %v1433 = vsel %vm229, %v1413, 0
        %v1436 = vsel %vm236, %v1425, 0
        %v1439 = vsel %vm236, %v1426, 0
        %v1442 = vsel %vm236, %v1427, 0
        %v1445 = vsel %vm236, %v1428, 0
        %1447 = vmatprep.subr.bf16.mxu0 %v1439
        %1448 = vmatpush1.bf16.msra.mxu0 %v1436
        %1449 = vmatprep.subr.bf16.mxu0 0
        %1450 = vmatpush1.bf16.msra.mxu0 0
        %1451 = vmatprep.subr.bf16.mxu0 0
        %1452 = vmatpush1.bf16.msra.mxu0 0
        %1453 = vmatprep.subr.bf16.mxu0 0
        %1454 = vmatpush1.bf16.msra.mxu0 0
        %1455 = vmatprep.subr.bf16.mxu0 0
        %1456 = vmatpush1.bf16.msra.mxu0 0
        %1457 = vmatprep.subr.bf16.mxu0 0
        %1458 = vmatpush1.bf16.msra.mxu0 0
        %1459 = vmatprep.subr.bf16.mxu0 0
        %1460 = vmatpush1.bf16.msra.mxu0 0
        %1461 = vmatprep.subr.bf16.mxu0 0
        %1462 = vmatpush1.bf16.msra.mxu0 0
        %1463 = vmatprep.subr.bf16.mxu0 0
        %1464 = vmatpush1.bf16.msra.mxu0 0
        %1465 = vmatprep.subr.bf16.mxu0 0
        %1466 = vmatpush1.bf16.msra.mxu0 0
        %1467 = vmatprep.subr.bf16.mxu0 0
        %1468 = vmatpush1.bf16.msra.mxu0 0
        %1469 = vmatprep.subr.bf16.mxu0 0
        %1470 = vmatpush1.bf16.msra.mxu0 0
        %1471 = vmatprep.subr.bf16.mxu0 0
        %1472 = vmatpush1.bf16.msra.mxu0 0
        %1473 = vmatprep.subr.bf16.mxu0 0
        %1474 = vmatpush1.bf16.msra.mxu0 0
        %1475 = vmatprep.subr.bf16.mxu0 0
        %1476 = vmatpush1.bf16.msra.mxu0 0
        %1477 = vmatprep.subr.bf16.mxu0 0
        %1478 = vmatpush1.bf16.msra.mxu0 0
        %1479 = vmatprep.mubr.bf16.mxu0 0
        %1480 = vmatmul.mubr.bf16.gmra.mrb[0].mxu0 %v1430
        %v1481 = vpop.f32.mrb[0].mxu0
        %v1482 = vadd.f32 0.0, %v1481
        %v1483 = vpop.f32.mrb[0].mxu0
        %v1484 = vadd.f32 0.0, %v1483
        %v1485 = vpop.f32.mrb[0].mxu0
        %v1486 = vadd.f32 0.0, %v1485
        %v1487 = vpop.f32.mrb[0].mxu0
        %v1488 = vadd.f32 0.0, %v1487
        %1489 = vmatprep.mubr.bf16.mxu0 0
        %1490 = vmatmul.mubr.bf16.gmra.mrb[0].mxu0 %v1433
        %v1491 = vpop.f32.mrb[0].mxu0
        %v1492 = vadd.f32 0.0, %v1491
        %v1493 = vpop.f32.mrb[0].mxu0
        %v1494 = vadd.f32 0.0, %v1493
        %v1495 = vpop.f32.mrb[0].mxu0
        %v1496 = vadd.f32 0.0, %v1495
        %v1497 = vpop.f32.mrb[0].mxu0
        %v1498 = vadd.f32 0.0, %v1497
        %1499 = vdwg.mxu0
        %1500 = vmatprep.subr.bf16.mxu0 %v1445
        %1501 = vmatpush1.bf16.msra.mxu0 %v1442
        %1502 = vmatprep.subr.bf16.mxu0 0
        %1503 = vmatpush1.bf16.msra.mxu0 0
        %1504 = vmatprep.subr.bf16.mxu0 0
        %1505 = vmatpush1.bf16.msra.mxu0 0
        %1506 = vmatprep.subr.bf16.mxu0 0
        %1507 = vmatpush1.bf16.msra.mxu0 0
        %1508 = vmatprep.subr.bf16.mxu0 0
        %1509 = vmatpush1.bf16.msra.mxu0 0
        %1510 = vmatprep.subr.bf16.mxu0 0
        %1511 = vmatpush1.bf16.msra.mxu0 0
        %1512 = vmatprep.subr.bf16.mxu0 0
        %1513 = vmatpush1.bf16.msra.mxu0 0
        %1514 = vmatprep.subr.bf16.mxu0 0
        %1515 = vmatpush1.bf16.msra.mxu0 0
        %1516 = vmatprep.subr.bf16.mxu0 0
        %1517 = vmatpush1.bf16.msra.mxu0 0
        %1518 = vmatprep.subr.bf16.mxu0 0
        %1519 = vmatpush1.bf16.msra.mxu0 0
        %1520 = vmatprep.subr.bf16.mxu0 0
        %1521 = vmatpush1.bf16.msra.mxu0 0
        %1522 = vmatprep.subr.bf16.mxu0 0
        %1523 = vmatpush1.bf16.msra.mxu0 0
        %1524 = vmatprep.subr.bf16.mxu0 0
        %1525 = vmatpush1.bf16.msra.mxu0 0
        %1526 = vmatprep.subr.bf16.mxu0 0
        %1527 = vmatpush1.bf16.msra.mxu0 0
        %1528 = vmatprep.subr.bf16.mxu0 0
        %1529 = vmatpush1.bf16.msra.mxu0 0
        %1530 = vmatprep.subr.bf16.mxu0 0
        %1531 = vmatpush1.bf16.msra.mxu0 0
        %1532 = vmatprep.mubr.bf16.mxu0 0
        %1533 = vmatmul.mubr.bf16.gmra.mrb[0].mxu0 %v1430
        %v1534 = vpop.f32.mrb[0].mxu0
        %v1535 = vadd.f32 0.0, %v1534
        %v1536 = vpop.f32.mrb[0].mxu0
        %v1537 = vadd.f32 0.0, %v1536
        %v1538 = vpop.f32.mrb[0].mxu0
        %v1539 = vadd.f32 0.0, %v1538
        %v1540 = vpop.f32.mrb[0].mxu0
        %v1541 = vadd.f32 0.0, %v1540
        %1542 = vmatprep.mubr.bf16.mxu0 0
        %1543 = vmatmul.mubr.bf16.gmra.mrb[0].mxu0 %v1433
        %v1544 = vpop.f32.mrb[0].mxu0
        %v1545 = vadd.f32 0.0, %v1544
        %v1546 = vpop.f32.mrb[0].mxu0
        %v1547 = vadd.f32 0.0, %v1546
        %v1548 = vpop.f32.mrb[0].mxu0
        %v1549 = vadd.f32 0.0, %v1548
        %v1550 = vpop.f32.mrb[0].mxu0
        %v1551 = vadd.f32 0.0, %v1550
        %1552 = vdwg.mxu0
        %v1553 = vadd.f32 %v1383, %v1482
        %v1554 = vadd.f32 %v1384, %v1484
        %v1555 = vadd.f32 %v1385, %v1535
        %v1556 = vadd.f32 %v1386, %v1537
        %v1557 = vadd.f32 %v1387, %v1486
        %v1558 = vadd.f32 %v1388, %v1488
        %v1559 = vadd.f32 %v1389, %v1539
        %v1560 = vadd.f32 %v1390, %v1541
        %v1561 = vadd.f32 %v1391, %v1492
        %v1562 = vadd.f32 %v1392, %v1494
        %v1563 = vadd.f32 %v1393, %v1545
        %v1564 = vadd.f32 %v1394, %v1547
        %v1565 = vadd.f32 %v1395, %v1496
        %v1566 = vadd.f32 %v1396, %v1498
        %v1567 = vadd.f32 %v1397, %v1549
        %v1568 = vadd.f32 %v1398, %v1551
        %s1569 = scalar_lea.vmem %s0, 128
        %v1570 = vld [vmem:[%s1569] sm:$0xf]
        %v1571 = vld [vmem:[%s1569 + $0x4] sm:$0xf]
        %v1572 = vld [vmem:[%s1569 + $0x8] sm:$0xf]
        %v1573 = vld [vmem:[%s1569 + $0xc] sm:$0xf]
        %v1578 = vunpack.c.l.b16 %v1570
        %v1579 = vunpack.c.l.b16 %v1571
        %v1580 = vunpack.c.l.b16 %v1572
        %v1581 = vunpack.c.l.b16 %v1573
        %v1582 = vpack.c.b16 %v1579, %v1578
        %v1583 = vpack.c.b16 %v1581, %v1580
        %1584 = vrot.lane.b32.xlu0 %v219, 90
        %v1585 = vpop.permute.xlu0 %1584
        %1586 = vrot.lane.b32.xlu0 %v227, 90
        %v1587 = vpop.permute.xlu0 %1586
        %1588 = vrot.lane.b32.xlu0 %v226, 90
        %v1589 = vpop.permute.xlu0 %1588
        %1590 = vrot.lane.b32.xlu0 %v228, 90
        %v1591 = vpop.permute.xlu0 %1590
        %1592 = vrot.lane.b32.xlu0 %v393, 90
        %v1593 = vpop.permute.xlu0 %1592
        %vm1594 = vcmask 736256
        %v1595 = vsel %vm1594, %v1585, %v1587
        %v1596 = vsel %vm1594, %v1587, %v1589
        %v1597 = vsel %vm1594, %v1589, %v1591
        %v1598 = vsel %vm1594, %v1591, %v1593
        %v1600 = vsel %vm229, %v1582, 0
        %v1603 = vsel %vm229, %v1583, 0
        %v1606 = vsel %vm236, %v1595, 0
        %v1609 = vsel %vm236, %v1596, 0
        %v1612 = vsel %vm236, %v1597, 0
        %v1615 = vsel %vm236, %v1598, 0
        %1617 = vmatprep.subr.bf16.mxu0 %v1609
        %1618 = vmatpush1.bf16.msra.mxu0 %v1606
        %1619 = vmatprep.subr.bf16.mxu0 0
        %1620 = vmatpush1.bf16.msra.mxu0 0
        %1621 = vmatprep.subr.bf16.mxu0 0
        %1622 = vmatpush1.bf16.msra.mxu0 0
        %1623 = vmatprep.subr.bf16.mxu0 0
        %1624 = vmatpush1.bf16.msra.mxu0 0
        %1625 = vmatprep.subr.bf16.mxu0 0
        %1626 = vmatpush1.bf16.msra.mxu0 0
        %1627 = vmatprep.subr.bf16.mxu0 0
        %1628 = vmatpush1.bf16.msra.mxu0 0
        %1629 = vmatprep.subr.bf16.mxu0 0
        %1630 = vmatpush1.bf16.msra.mxu0 0
        %1631 = vmatprep.subr.bf16.mxu0 0
        %1632 = vmatpush1.bf16.msra.mxu0 0
        %1633 = vmatprep.subr.bf16.mxu0 0
        %1634 = vmatpush1.bf16.msra.mxu0 0
        %1635 = vmatprep.subr.bf16.mxu0 0
        %1636 = vmatpush1.bf16.msra.mxu0 0
        %1637 = vmatprep.subr.bf16.mxu0 0
        %1638 = vmatpush1.bf16.msra.mxu0 0
        %1639 = vmatprep.subr.bf16.mxu0 0
        %1640 = vmatpush1.bf16.msra.mxu0 0
        %1641 = vmatprep.subr.bf16.mxu0 0
        %1642 = vmatpush1.bf16.msra.mxu0 0
        %1643 = vmatprep.subr.bf16.mxu0 0
        %1644 = vmatpush1.bf16.msra.mxu0 0
        %1645 = vmatprep.subr.bf16.mxu0 0
        %1646 = vmatpush1.bf16.msra.mxu0 0
        %1647 = vmatprep.subr.bf16.mxu0 0
        %1648 = vmatpush1.bf16.msra.mxu0 0
        %1649 = vmatprep.mubr.bf16.mxu0 0
        %1650 = vmatmul.mubr.bf16.gmra.mrb[0].mxu0 %v1600
        %v1651 = vpop.f32.mrb[0].mxu0
        %v1652 = vadd.f32 0.0, %v1651
        %v1653 = vpop.f32.mrb[0].mxu0
        %v1654 = vadd.f32 0.0, %v1653
        %v1655 = vpop.f32.mrb[0].mxu0
        %v1656 = vadd.f32 0.0, %v1655
        %v1657 = vpop.f32.mrb[0].mxu0
        %v1658 = vadd.f32 0.0, %v1657
        %1659 = vmatprep.mubr.bf16.mxu0 0
        %1660 = vmatmul.mubr.bf16.gmra.mrb[0].mxu0 %v1603
        %v1661 = vpop.f32.mrb[0].mxu0
        %v1662 = vadd.f32 0.0, %v1661
        %v1663 = vpop.f32.mrb[0].mxu0
        %v1664 = vadd.f32 0.0, %v1663
        %v1665 = vpop.f32.mrb[0].mxu0
        %v1666 = vadd.f32 0.0, %v1665
        %v1667 = vpop.f32.mrb[0].mxu0
        %v1668 = vadd.f32 0.0, %v1667
        %1669 = vdwg.mxu0
        %1670 = vmatprep.subr.bf16.mxu0 %v1615
        %1671 = vmatpush1.bf16.msra.mxu0 %v1612
        %1672 = vmatprep.subr.bf16.mxu0 0
        %1673 = vmatpush1.bf16.msra.mxu0 0
        %1674 = vmatprep.subr.bf16.mxu0 0
        %1675 = vmatpush1.bf16.msra.mxu0 0
        %1676 = vmatprep.subr.bf16.mxu0 0
        %1677 = vmatpush1.bf16.msra.mxu0 0
        %1678 = vmatprep.subr.bf16.mxu0 0
        %1679 = vmatpush1.bf16.msra.mxu0 0
        %1680 = vmatprep.subr.bf16.mxu0 0
        %1681 = vmatpush1.bf16.msra.mxu0 0
        %1682 = vmatprep.subr.bf16.mxu0 0
        %1683 = vmatpush1.bf16.msra.mxu0 0
        %1684 = vmatprep.subr.bf16.mxu0 0
        %1685 = vmatpush1.bf16.msra.mxu0 0
        %1686 = vmatprep.subr.bf16.mxu0 0
        %1687 = vmatpush1.bf16.msra.mxu0 0
        %1688 = vmatprep.subr.bf16.mxu0 0
        %1689 = vmatpush1.bf16.msra.mxu0 0
        %1690 = vmatprep.subr.bf16.mxu0 0
        %1691 = vmatpush1.bf16.msra.mxu0 0
        %1692 = vmatprep.subr.bf16.mxu0 0
        %1693 = vmatpush1.bf16.msra.mxu0 0
        %1694 = vmatprep.subr.bf16.mxu0 0
        %1695 = vmatpush1.bf16.msra.mxu0 0
        %1696 = vmatprep.subr.bf16.mxu0 0
        %1697 = vmatpush1.bf16.msra.mxu0 0
        %1698 = vmatprep.subr.bf16.mxu0 0
        %1699 = vmatpush1.bf16.msra.mxu0 0
        %1700 = vmatprep.subr.bf16.mxu0 0
        %1701 = vmatpush1.bf16.msra.mxu0 0
        %1702 = vmatprep.mubr.bf16.mxu0 0
        %1703 = vmatmul.mubr.bf16.gmra.mrb[0].mxu0 %v1600
        %v1704 = vpop.f32.mrb[0].mxu0
        %v1705 = vadd.f32 0.0, %v1704
        %v1706 = vpop.f32.mrb[0].mxu0
        %v1707 = vadd.f32 0.0, %v1706
        %v1708 = vpop.f32.mrb[0].mxu0
        %v1709 = vadd.f32 0.0, %v1708
        %v1710 = vpop.f32.mrb[0].mxu0
        %v1711 = vadd.f32 0.0, %v1710
        %1712 = vmatprep.mubr.bf16.mxu0 0
        %1713 = vmatmul.mubr.bf16.gmra.mrb[0].mxu0 %v1603
        %v1714 = vpop.f32.mrb[0].mxu0
        %v1715 = vadd.f32 0.0, %v1714
        %v1716 = vpop.f32.mrb[0].mxu0
        %v1717 = vadd.f32 0.0, %v1716
        %v1718 = vpop.f32.mrb[0].mxu0
        %v1719 = vadd.f32 0.0, %v1718
        %v1720 = vpop.f32.mrb[0].mxu0
        %v1721 = vadd.f32 0.0, %v1720
        %1722 = vdwg.mxu0
        %v1723 = vadd.f32 %v1553, %v1652
        %v1724 = vadd.f32 %v1554, %v1654
        %v1725 = vadd.f32 %v1555, %v1705
        %v1726 = vadd.f32 %v1556, %v1707
        %v1727 = vadd.f32 %v1557, %v1656
        %v1728 = vadd.f32 %v1558, %v1658
        %v1729 = vadd.f32 %v1559, %v1709
        %v1730 = vadd.f32 %v1560, %v1711
        %v1731 = vadd.f32 %v1561, %v1662
        %v1732 = vadd.f32 %v1562, %v1664
        %v1733 = vadd.f32 %v1563, %v1715
        %v1734 = vadd.f32 %v1564, %v1717
        %v1735 = vadd.f32 %v1565, %v1666
        %v1736 = vadd.f32 %v1566, %v1668
        %v1737 = vadd.f32 %v1567, %v1719
        %v1738 = vadd.f32 %v1568, %v1721
        %1739 = vst [vmem:[%s163] sm:$0xff] %v1723
        %1740 = vst [vmem:[%s163 + $0x8] sm:$0xff] %v1724
        %1741 = vst [vmem:[%s163 + $0x10] sm:$0xff] %v1725
        %1742 = vst [vmem:[%s163 + $0x18] sm:$0xff] %v1726
        %1743 = vst [vmem:[%s163 + $0x20] sm:$0xff] %v1727
        %1744 = vst [vmem:[%s163 + $0x28] sm:$0xff] %v1728
        %1745 = vst [vmem:[%s163 + $0x30] sm:$0xff] %v1729
        %1746 = vst [vmem:[%s163 + $0x38] sm:$0xff] %v1730
        %1747 = vst [vmem:[%s163 + $0x40] sm:$0xff] %v1731
        %1748 = vst [vmem:[%s163 + $0x48] sm:$0xff] %v1732
        %1749 = vst [vmem:[%s163 + $0x50] sm:$0xff] %v1733
        %1750 = vst [vmem:[%s163 + $0x58] sm:$0xff] %v1734
        %1751 = vst [vmem:[%s163 + $0x60] sm:$0xff] %v1735
        %1752 = vst [vmem:[%s163 + $0x68] sm:$0xff] %v1736
        %1753 = vst [vmem:[%s163 + $0x70] sm:$0xff] %v1737
        %1754 = vst [vmem:[%s163 + $0x78] sm:$0xff] %v1738
        %s1755 = sand.u32 %s93, 1
        %s1756 = scalar_lea.sflag [#allocation3], %s1755
        %s1757 = sand.u32 %s93, 1
        %s1758 = smul.addr %s1757, 128
        %s1759 = scalar_lea.vmem [#allocation2], %s1758
        // Predicated region
        $region33: #{tpu_custom_call.1} parent=31 // pred_check
          %p1760 = pneg %p103
        $region34: #{tpu_custom_call.1} parent=31 // pred_check_branch
          %1762 = sbr.rel (%p1760) target = $region36
        $region35: #{tpu_custom_call.1} parent=31 // pred_region
          %s1763 = smul.u32 4, %s17
          %s1765 = ssub.s32 2048, 2048
          %1766 = vsyncadd %s1756, %s1765
          %s1767 = smul.addr %s1763, 128
          %s1768 = scalar_lea.hbm %s3, %s1767
          %s1769 = sshll.u32 %s1759, 4
          %s1770 = int_to_ptr.vmem [resolvable:$true] %s1769
          %1775 = dma.vmem_to_hbm [thread:$0]  %s1770, 2048, %s1768, %s1756, 512, 1024, 32
        $region36: #{tpu_custom_call.1} parent=31 // pred_fallthru
          _
      $region32: #{tpu_custom_call.1} parent=5 // pred_fallthru
        _
      %p1776 = scmp.le.s32.totalorder 2, %s12
      // Predicated region
      $region37: #{tpu_custom_call.1} parent=5 // pred_check
        %p1777 = pneg %p1776
      $region38: #{tpu_custom_call.1} parent=5 // pred_check_branch
        %1779 = sbr.rel (%p1777) target = $region40
      $region39: #{tpu_custom_call.1} parent=5 // pred_region
        %s1780 = ssub.s32 %s12, 2
        // Predicated region
        $region41: #{tpu_custom_call.1} parent=39 // pred_check
          %p1781 = pneg %p109
        $region42: #{tpu_custom_call.1} parent=39 // pred_check_branch
          %1783 = sbr.rel (%p1781) target = $region44
        $region43: #{tpu_custom_call.1} parent=39 // pred_region
          %s1784 = sand.u32 %s94, 1
          %s1785 = scalar_lea.sflag [#allocation3], %s1784
          %s1786 = sand.u32 %s94, 1
          %s1787 = smul.addr %s1786, 128
          %s1788 = scalar_lea.vmem [#allocation2], %s1787
          %1789 = dma.done %s1785, 2048
        $region44: #{tpu_custom_call.1} parent=39 // pred_fallthru
          _
      $region40: #{tpu_custom_call.1} parent=5 // pred_fallthru
        _
    $region6: #{tpu_custom_call.1} parent=1 // loop_footer
      %s16 = sadd.s32 1, %s12
    $region7: #{tpu_custom_call.1} parent=1 // loop_footer_branch
      %11 = sbr.rel target = $region3
    $region8: #{tpu_custom_call.1} parent=1 // loop_exit
      _
    %1790 = vsyncpa [#allocation3], 1
    %s1791 = scalar_lea.sflag [#allocation3], 1
    %1792 = vsyncpa %s1791, 1

</llo_original>
